<compile_context>
chip_gen: v6e
topology: v6e:2x2x1
jax: 0.10.0
libtpu: 0.0.40
codegen_flags: <defaults>
</compile_context>

<pallas_src>
import math

import jax
import jax.numpy as jnp
from jax.experimental import pallas as pl
from jax.experimental.pallas import tpu as pltpu

# ----- configuration (mirrors cfg consumed by the PyTorch __init__) -----
EMOTION_DIM = 25          # TransEncoder(25, 128) input feature dim
LATENT_DIM = 128          # transformer d_model / z_dim / hidden_dim
N_HEAD = 4
HEAD_DIM = LATENT_DIM // N_HEAD
FF_DIM = 2 * LATENT_DIM   # dim_feedforward = latent_dim * 2
Z_DIM = 128
HIDDEN_DIM = 128
EMB_DIMS = (128, 128)
COEFF_3DMM_DIM = 58
WINDOW_SIZE = 8
SEQ_LEN = 32              # frame_num, divisible by window_size
BATCH = 4
LN_EPS = 1e-5

# ----- square-weight slab layout (row-block index, each block is 128 rows) -----
SQ_W_LIN, SQ_W_Q, SQ_MASK, SQ_W_O, SQ_W_M1F, SQ_W_M2, SQ_W_OUT, SQ_W_C1, SQ_W_C2, SQ_W_F2 = range(10)
N_SQ_BLOCKS = 11          # w_f2 is (256,128) and occupies row-blocks 9..10

# ----- bias slab layout (row index into a (16, 256) fp32 slab) -----
B_LIN, B_Q, B_KV, B_O, G1, BE1, B_F1, B_F2, G2, BE2, B_M1F, B_M2, B_OUT, B_C1, B_C2 = range(15)
N_BIAS_ROWS = 16


def _layernorm(x, g, b):
    mu = jnp.mean(x, axis=-1, keepdims=True)
    var = jnp.mean((x - mu) ** 2, axis=-1, keepdims=True)
    return (x - mu) * jax.lax.rsqrt(var + LN_EPS) * g + b


# ---------------------------------------------------------------------------
# Fused encoder + decoder kernel
#   x_ref    : (BB, W, 128) fp32, feature dim zero-padded 25 -> 128
#   sq_ref   : (11*128, 128) bf16 square-weight slab
#   kvf1_ref : (128, 512)    bf16 [W_kv | W_ff1]
#   bias_ref : (16, 256)     fp32 bias/LN slab
#   out_ref  : (BB, 256)     fp32 [y_pad(128) | coeff_pad(128)]
# ---------------------------------------------------------------------------
def fused_kernel(x_ref, sq_ref, kvf1_ref, bias_ref, out_ref):
    bb, win, d = x_ref.shape
    bf16 = jnp.bfloat16

    def sq(k, nblk=1):                       # static, lane-aligned slab slice
        return sq_ref[k * 128:(k + nblk) * 128, :]

    def bias(r, width=128):
        return bias_ref[r:r + 1, 0:width]

    def mm(a, w):                            # bf16 MXU matmul, fp32 accumulation
        return jnp.dot(a.astype(bf16), w, preferred_element_type=jnp.float32)

    # ---- encoder: Linear(25->128) + 1x TransformerEncoderLayer (post-norm), last step only ----
    x2 = x_ref[...].reshape(bb * win, d)                        # flatten for MXU fill
    h2 = mm(x2, sq(SQ_W_LIN)) + bias(B_LIN)                     # (bb*W, 128)

    # K/V over the full window; Q only at the last position (the only one consumed).
    kv = (mm(h2, kvf1_ref[:, 0:2 * d]) + bias(B_KV, 2 * d)).reshape(bb, win, 2 * d)
    k3 = kv[:, :, :d]                                           # (bb, W, 128)
    v3 = kv[:, :, d:]                                           # (bb, W, 128)

    # last-position activations computed directly from the input (no reshape+gather of h2)
    h_last = mm(x_ref[:, win - 1, :], sq(SQ_W_LIN)) + bias(B_LIN)   # (bb, 128)
    q = mm(h_last, sq(SQ_W_Q)) + bias(B_Q)                      # 1/sqrt(head_dim) folded in

    # Head-batched attention kept lane-dense: per-head QK^T via a block-indicator matmul,
    # producing each head's score replicated across that head's 32 lanes.
    s_wide = q[:, None, :] * k3                                 # (bb, W, 128) fp32
    seg = mm(s_wide.reshape(bb * win, d), sq(SQ_MASK)).reshape(bb, win, d)
    seg = seg - jnp.max(seg, axis=1, keepdims=True)             # softmax over the window axis
    e = jnp.exp(seg)
    p = e / jnp.sum(e, axis=1, keepdims=True)
    ctx = jnp.sum(p * v3, axis=1)                               # (bb, 128) == concat of heads
    attn = mm(ctx, sq(SQ_W_O)) + bias(B_O)

    h1 = _layernorm(h_last + attn, bias(G1), bias(BE1))
    f = jnp.maximum(mm(h1, kvf1_ref[:, 2 * d:4 * d]) + bias(B_F1, 2 * d), 0.0)
    f = mm(f, sq(SQ_W_F2, 2)) + bias(B_F2)
    hx = _layernorm(h1 + f, bias(G2), bias(BE2))                # == x_rnn(x)[-1]

    # ---- decoder: (fc_z_dec folded into m1) -> tanh MLP -> d_out, coeff_reg ----
    m = jnp.tanh(mm(hx, sq(SQ_W_M1F)) + bias(B_M1F))            # dropout == identity (eval)
    m = jnp.tanh(mm(m, sq(SQ_W_M2)) + bias(B_M2))
    y = mm(m, sq(SQ_W_OUT)) + bias(B_OUT)                       # (bb, 128), cols >= 25 exactly 0
    c1 = jnp.maximum(mm(y, sq(SQ_W_C1)) + bias(B_C1), 0.0)
    c = mm(c1, sq(SQ_W_C2)) + bias(B_C2)                        # (bb, 128), cols >= 58 exactly 0

    out_ref[:, 0:d] = y
    out_ref[:, d:2 * d] = c


# ---------------------------------------------------------------------------
# Wrappers
# ---------------------------------------------------------------------------
def fused_call(x_pad, params):
    """x_pad: (B', W, 128) -> out: (B', 256) = [y_pad | coeff_pad]."""
    Bp, win, d = x_pad.shape
    # Split the batch axis over 2 grid steps when possible: on v7x the two steps are
    # sharded across the two TensorCores ("parallel"); on v5e/v6e the extra step costs
    # ~0.35 us which is negligible next to the DMA savings from the slab consolidation.
    nsteps = 2 if (Bp % 16 == 0) else 1
    BB = Bp // nsteps
    sq, kvf1, bias = params["sq"], params["kvf1"], params["bias"]
    return pl.pallas_call(
        fused_kernel,
        out_shape=jax.ShapeDtypeStruct((Bp, 2 * LATENT_DIM), jnp.float32),
        grid=(nsteps,),
        in_specs=[
            pl.BlockSpec((BB, win, d), lambda i: (i, 0, 0)),
            pl.BlockSpec(sq.shape, lambda i: (0, 0)),       # whole slab, resident
            pl.BlockSpec(kvf1.shape, lambda i: (0, 0)),
            pl.BlockSpec(bias.shape, lambda i: (0, 0)),
        ],
        out_specs=pl.BlockSpec((BB, 2 * LATENT_DIM), lambda i: (i, 0)),
        compiler_params=pltpu.CompilerParams(dimension_semantics=("parallel",)),
    )(x_pad, sq, kvf1, bias)


def forward(params, listener_emotion, listener_3dmm=None):
    B, T, F = listener_emotion.shape
    assert T % WINDOW_SIZE == 0, "seq_len must be divisible by window_size"
    Bp = B * (T // WINDOW_SIZE)
    x = listener_emotion.reshape(Bp, WINDOW_SIZE, F)
    x_pad = jnp.pad(x, ((0, 0), (0, 0), (0, LATENT_DIM - F)))   # lane-dense input (25 -> 128)

    out = fused_call(x_pad, params)
    y = out[:, :EMOTION_DIM]
    c = out[:, LATENT_DIM:LATENT_DIM + COEFF_3DMM_DIM]

    # The window-decode loop emits the same y_i every step -> broadcast over the window.
    Y_r = jnp.broadcast_to(y[:, None, :], (Bp, WINDOW_SIZE, EMOTION_DIM)
                           ).reshape(B, T, EMOTION_DIM)
    C = jnp.broadcast_to(c[:, None, :], (Bp, WINDOW_SIZE, COEFF_3DMM_DIM)
                         ).reshape(B, T, COEFF_3DMM_DIM)
    return {
        "prediction": Y_r,
        "target": listener_emotion,
        "coefficients_3dmm": C,
        "target_coefficients": listener_3dmm,
        "emb_loss": 0.0,
        "info": None,
    }


# ---------------------------------------------------------------------------
# Parameters: synthetic PyTorch-layout init + conversion to the kernel's slab layout
# ---------------------------------------------------------------------------
def init_params(key):
    """Synthetic weights in the native PyTorch (out, in) layout."""
    ks = jax.random.split(key, 24)

    def w(k, shape, scale=0.05):
        return (scale * jax.random.normal(k, shape)).astype(jnp.float32)

    p = {}
    # TransEncoder
    p["w_lin"] = w(ks[0], (LATENT_DIM, EMOTION_DIM))
    p["b_lin"] = w(ks[1], (1, LATENT_DIM))
    p["w_qkv"] = w(ks[2], (3 * LATENT_DIM, LATENT_DIM))   # MHA in_proj_weight
    p["b_qkv"] = w(ks[3], (1, 3 * LATENT_DIM))
    p["w_o"] = w(ks[4], (LATENT_DIM, LATENT_DIM))         # MHA out_proj
    p["b_o"] = w(ks[5], (1, LATENT_DIM))
    p["g1"] = jnp.ones((1, LATENT_DIM), jnp.float32)
    p["be1"] = jnp.zeros((1, LATENT_DIM), jnp.float32)
    p["w_f1"] = w(ks[6], (FF_DIM, LATENT_DIM))
    p["b_f1"] = w(ks[7], (1, FF_DIM))
    p["w_f2"] = w(ks[8], (LATENT_DIM, FF_DIM))
    p["b_f2"] = w(ks[9], (1, LATENT_DIM))
    p["g2"] = jnp.ones((1, LATENT_DIM), jnp.float32)
    p["be2"] = jnp.zeros((1, LATENT_DIM), jnp.float32)
    # Decoder path
    p["w_dec"] = w(ks[10], (HIDDEN_DIM, Z_DIM))            # fc_z_dec
    p["b_dec"] = w(ks[11], (1, HIDDEN_DIM))
    p["w_m1"] = w(ks[12], (EMB_DIMS[0], HIDDEN_DIM))       # d_mlp layer 1
    p["b_m1"] = w(ks[13], (1, EMB_DIMS[0]))
    p["w_m2"] = w(ks[14], (EMB_DIMS[1], EMB_DIMS[0]))      # d_mlp layer 2
    p["b_m2"] = w(ks[15], (1, EMB_DIMS[1]))
    p["w_out"] = w(ks[16], (EMOTION_DIM, EMB_DIMS[1]))     # d_out
    p["b_out"] = w(ks[17], (1, EMOTION_DIM))
    p["w_c1"] = w(ks[18], (HIDDEN_DIM, EMOTION_DIM))       # coeff_reg[0]
    p["b_c1"] = w(ks[19], (1, HIDDEN_DIM))
    p["w_c2"] = w(ks[20], (COEFF_3DMM_DIM, HIDDEN_DIM))    # coeff_reg[2]
    p["b_c2"] = w(ks[21], (1, COEFF_3DMM_DIM))
    return p


def prepare_params(raw):
    """PyTorch (out,in) layout -> three kernel slabs.

    * all weights transposed to (in,out), 25/58 dims zero-padded to 128 lanes
    * 1/sqrt(head_dim) folded into the Q projection
    * fc_z_dec folded into the first decoder-MLP layer (exact up to fp32 reassociation)
    * square weights (+ w_f2) row-stacked into one bf16 slab, W_kv|W_ff1 into another,
      every bias / LN vector into a (16,256) fp32 slab
    """
    D = LATENT_DIM
    scale = 1.0 / math.sqrt(HEAD_DIM)

    def pad_cols(a, n):
        return jnp.pad(a, ((0, 0), (0, D - n)))

    # --- square-weight slab (11 row-blocks of 128) ---
    w_lin = jnp.pad(raw["w_lin"].T, ((0, D - EMOTION_DIM), (0, 0)))        # (128,128)
    w_q = raw["w_qkv"][:D].T * scale                                       # (128,128)
    head_id = jnp.arange(D) // HEAD_DIM
    head_mask = (head_id[:, None] == head_id[None, :]).astype(jnp.float32)  # (128,128) 0/1
    w_o = raw["w_o"].T
    w_m1f = raw["w_dec"].T @ raw["w_m1"].T                                 # fc_z_dec folded in
    w_m2 = raw["w_m2"].T
    w_out = pad_cols(raw["w_out"].T, EMOTION_DIM)
    w_c1 = jnp.pad(raw["w_c1"].T, ((0, D - EMOTION_DIM), (0, 0)))
    w_c2 = pad_cols(raw["w_c2"].T, COEFF_3DMM_DIM)
    w_f2 = raw["w_f2"].T                                                   # (256,128)
    sq = jnp.concatenate(
        [w_lin, w_q, head_mask, w_o, w_m1f, w_m2, w_out, w_c1, w_c2, w_f2],
        axis=0).astype(jnp.bfloat16)                                       # (1408,128)
    assert sq.shape == (N_SQ_BLOCKS * 128, 128)

    # --- wide-weight slab [W_kv | W_ff1] ---
    w_kv = raw["w_qkv"][D:].T                                              # (128,256) [K|V]
    w_f1 = raw["w_f1"].T                                                   # (128,256)
    kvf1 = jnp.concatenate([w_kv, w_f1], axis=1).astype(jnp.bfloat16)      # (128,512)

    # --- bias slab (fp32) ---
    b_q = raw["b_qkv"][:, :D] * scale
    b_kv = raw["b_qkv"][:, D:]                                             # (1,256)
    b_m1f = raw["b_dec"] @ raw["w_m1"].T + raw["b_m1"]                     # fc_z_dec folded in

    def row(b):
        return jnp.pad(b, ((0, 0), (0, 2 * D - b.shape[1])))

    rows = [None] * N_BIAS_ROWS
    rows[B_LIN] = row(raw["b_lin"])
    rows[B_Q] = row(b_q)
    rows[B_KV] = row(b_kv)
    rows[B_O] = row(raw["b_o"])
    rows[G1] = row(raw["g1"])
    rows[BE1] = row(raw["be1"])
    rows[B_F1] = row(raw["b_f1"])
    rows[B_F2] = row(raw["b_f2"])
    rows[G2] = row(raw["g2"])
    rows[BE2] = row(raw["be2"])
    rows[B_M1F] = row(b_m1f)
    rows[B_M2] = row(raw["b_m2"])
    rows[B_OUT] = row(pad_cols(raw["b_out"], EMOTION_DIM))
    rows[B_C1] = row(raw["b_c1"])
    rows[B_C2] = row(pad_cols(raw["b_c2"], COEFF_3DMM_DIM))
    rows[15] = jnp.zeros((1, 2 * D), jnp.float32)
    bias = jnp.concatenate(rows, axis=0).astype(jnp.float32)               # (16,256)

    return {"sq": sq, "kvf1": kvf1, "bias": bias}


# ---------------------------------------------------------------------------
# Pure-JAX fp32 reference (non-Pallas) for validation, written against the RAW
# PyTorch-layout weights and the full-window computation.
# ---------------------------------------------------------------------------
def reference_forward(raw, listener_emotion):
    B, T, F = listener_emotion.shape
    Bp = B * (T // WINDOW_SIZE)
    D = LATENT_DIM
    x = listener_emotion.reshape(Bp, WINDOW_SIZE, F)
    h = x @ raw["w_lin"].T + raw["b_lin"]
    wq, wk, wv = raw["w_qkv"][:D], raw["w_qkv"][D:2 * D], raw["w_qkv"][2 * D:]
    bq, bk, bv = raw["b_qkv"][:, :D], raw["b_qkv"][:, D:2 * D], raw["b_qkv"][:, 2 * D:]
    q = (h @ wq.T + bq).reshape(Bp, WINDOW_SIZE, N_HEAD, HEAD_DIM)
    k = (h @ wk.T + bk).reshape(Bp, WINDOW_SIZE, N_HEAD, HEAD_DIM)
    v = (h @ wv.T + bv).reshape(Bp, WINDOW_SIZE, N_HEAD, HEAD_DIM)
    s = jnp.einsum("bqhd,bkhd->bhqk", q, k) / math.sqrt(HEAD_DIM)
    p = jax.nn.softmax(s, axis=-1)
    ctx = jnp.einsum("bhqk,bkhd->bqhd", p, v).reshape(Bp, WINDOW_SIZE, D)
    attn = ctx @ raw["w_o"].T + raw["b_o"]
    h1 = _layernorm(h + attn, raw["g1"], raw["be1"])
    f = jnp.maximum(h1 @ raw["w_f1"].T + raw["b_f1"], 0.0)
    f = f @ raw["w_f2"].T + raw["b_f2"]
    hx = _layernorm(h1 + f, raw["g2"], raw["be2"])[:, -1, :]
    z = hx @ raw["w_dec"].T + raw["b_dec"]
    m = jnp.tanh(z @ raw["w_m1"].T + raw["b_m1"])
    m = jnp.tanh(m @ raw["w_m2"].T + raw["b_m2"])
    y = m @ raw["w_out"].T + raw["b_out"]
    c = jnp.maximum(y @ raw["w_c1"].T + raw["b_c1"], 0.0) @ raw["w_c2"].T + raw["b_c2"]
    Y_r = jnp.broadcast_to(y[:, None, :], (Bp, WINDOW_SIZE, EMOTION_DIM)
                           ).reshape(B, T, EMOTION_DIM)
    C = jnp.broadcast_to(c[:, None, :], (Bp, WINDOW_SIZE, COEFF_3DMM_DIM)
                         ).reshape(B, T, COEFF_3DMM_DIM)
    return Y_r, C


if __name__ == "__main__":
    key = jax.random.PRNGKey(0)
    pkey, xkey, ckey = jax.random.split(key, 3)
    raw = init_params(pkey)
    params = prepare_params(raw)
    listener_emotion = jax.random.normal(xkey, (BATCH, SEQ_LEN, EMOTION_DIM), jnp.float32)
    listener_3dmm = jax.random.normal(ckey, (BATCH, SEQ_LEN, COEFF_3DMM_DIM), jnp.float32)

    out = forward(params, listener_emotion, listener_3dmm)
    jax.block_until_ready(out["prediction"])
    jax.block_until_ready(out["coefficients_3dmm"])

    assert out["prediction"].shape == (BATCH, SEQ_LEN, EMOTION_DIM)
    assert out["coefficients_3dmm"].shape == (BATCH, SEQ_LEN, COEFF_3DMM_DIM)

    # correctness vs. pure-JAX fp32 reference; tolerance relaxed for bf16 MXU operands
    # (LayerNorm/softmax/residual math stays fp32, accumulation fp32).
    ref_y, ref_c = reference_forward(raw, listener_emotion)
    err_y = float(jnp.max(jnp.abs(out["prediction"] - ref_y)))
    err_c = float(jnp.max(jnp.abs(out["coefficients_3dmm"] - ref_c)))
    assert err_y < 5e-2 and err_c < 5e-2, (err_y, err_c)

    print("KERNEL_OK")
</pallas_src>

<mosaic_0001>
module attributes {stable_mosaic.version = 11 : i64} {
  func.func @fused_kernel(%arg0: i32, %arg1: memref<8x8x128xf32, #tpu.memory_space<vmem>>, %arg2: memref<1408x128xbf16, #tpu.memory_space<vmem>>, %arg3: memref<128x512xbf16, #tpu.memory_space<vmem>>, %arg4: memref<16x256xf32, #tpu.memory_space<vmem>>, %arg5: memref<8x256xf32, #tpu.memory_space<vmem>>) attributes {dimension_semantics = [#tpu.dimension_semantics<parallel>], iteration_bounds = array<i64: 2>, scalar_prefetch = 0 : i64, scratch_operands = 0 : i64, tpu.core_type = #tpu.core_type<tc>, window_params = [{transform_indices = @transform_0, window_bounds = array<i64: 8, 8, 128>}, {pipeline_mode = #tpu.pipeline_mode<synchronous>, transform_indices = @transform_1, window_bounds = array<i64: 1408, 128>}, {pipeline_mode = #tpu.pipeline_mode<synchronous>, transform_indices = @transform_2, window_bounds = array<i64: 128, 512>}, {pipeline_mode = #tpu.pipeline_mode<synchronous>, transform_indices = @transform_3, window_bounds = array<i64: 16, 256>}, {transform_indices = @transform_4, window_bounds = array<i64: 8, 256>}]} {
    %c0 = arith.constant 0 : index
    %c0_0 = arith.constant 0 : index
    %c0_1 = arith.constant 0 : index
    %0 = vector.load %arg1[%c0, %c0_0, %c0_1] : memref<8x8x128xf32, #tpu.memory_space<vmem>>, vector<8x8x128xf32>
    %1 = vector.shape_cast %0 : vector<8x8x128xf32> to vector<64x128xf32>
    %c0_2 = arith.constant 0 : index
    %c0_3 = arith.constant 0 : index
    %2 = vector.load %arg2[%c0_2, %c0_3] : memref<1408x128xbf16, #tpu.memory_space<vmem>>, vector<128x128xbf16>
    %3 = arith.truncf %1 : vector<64x128xf32> to vector<64x128xbf16>
    %cst = arith.constant dense<0.000000e+00> : vector<64x128xf32>
    %4 = tpu.matmul %3, %2, %cst {dimension_numbers = #tpu.dot_dimension_numbers<[1], [0], [0], [1], [0, 0, 1, 1], [], []>} : vector<64x128xbf16>, vector<128x128xbf16>, vector<64x128xf32> -> vector<64x128xf32>
    %c0_4 = arith.constant 0 : index
    %c0_5 = arith.constant 0 : index
    %5 = vector.load %arg4[%c0_4, %c0_5] : memref<16x256xf32, #tpu.memory_space<vmem>>, vector<1x128xf32>
    %6 = vector.broadcast %5 : vector<1x128xf32> to vector<64x128xf32>
    %7 = arith.addf %4, %6 : vector<64x128xf32>
    %c0_6 = arith.constant 0 : index
    %c0_7 = arith.constant 0 : index
    %8 = vector.load %arg3[%c0_6, %c0_7] : memref<128x512xbf16, #tpu.memory_space<vmem>>, vector<128x256xbf16>
    %9 = arith.truncf %7 : vector<64x128xf32> to vector<64x128xbf16>
    %cst_8 = arith.constant dense<0.000000e+00> : vector<64x256xf32>
    %10 = tpu.matmul %9, %8, %cst_8 {dimension_numbers = #tpu.dot_dimension_numbers<[1], [0], [0], [1], [0, 0, 1, 1], [], []>} : vector<64x128xbf16>, vector<128x256xbf16>, vector<64x256xf32> -> vector<64x256xf32>
    %c2 = arith.constant 2 : index
    %c0_9 = arith.constant 0 : index
    %11 = vector.load %arg4[%c2, %c0_9] : memref<16x256xf32, #tpu.memory_space<vmem>>, vector<1x256xf32>
    %12 = vector.broadcast %11 : vector<1x256xf32> to vector<64x256xf32>
    %13 = arith.addf %10, %12 : vector<64x256xf32>
    %14 = vector.shape_cast %13 : vector<64x256xf32> to vector<8x8x256xf32>
    %15 = vector.extract_strided_slice %14 {offsets = [0, 0, 0], sizes = [8, 8, 128], strides = [1, 1, 1]} : vector<8x8x256xf32> to vector<8x8x128xf32>
    %16 = vector.extract_strided_slice %14 {offsets = [0, 0, 128], sizes = [8, 8, 128], strides = [1, 1, 1]} : vector<8x8x256xf32> to vector<8x8x128xf32>
    %c0_10 = arith.constant 0 : index
    %c7 = arith.constant 7 : index
    %c0_11 = arith.constant 0 : index
    %17 = vector.load %arg1[%c0_10, %c7, %c0_11] : memref<8x8x128xf32, #tpu.memory_space<vmem>>, vector<8x1x128xf32>
    %18 = vector.shape_cast %17 : vector<8x1x128xf32> to vector<8x128xf32>
    %c0_12 = arith.constant 0 : index
    %c0_13 = arith.constant 0 : index
    %19 = vector.load %arg2[%c0_12, %c0_13] : memref<1408x128xbf16, #tpu.memory_space<vmem>>, vector<128x128xbf16>
    %20 = arith.truncf %18 : vector<8x128xf32> to vector<8x128xbf16>
    %cst_14 = arith.constant dense<0.000000e+00> : vector<8x128xf32>
    %21 = tpu.matmul %20, %19, %cst_14 {dimension_numbers = #tpu.dot_dimension_numbers<[1], [0], [0], [1], [0, 0, 1, 1], [], []>} : vector<8x128xbf16>, vector<128x128xbf16>, vector<8x128xf32> -> vector<8x128xf32>
    %c0_15 = arith.constant 0 : index
    %c0_16 = arith.constant 0 : index
    %22 = vector.load %arg4[%c0_15, %c0_16] : memref<16x256xf32, #tpu.memory_space<vmem>>, vector<1x128xf32>
    %23 = vector.broadcast %22 : vector<1x128xf32> to vector<8x128xf32>
    %24 = arith.addf %21, %23 : vector<8x128xf32>
    %c128 = arith.constant 128 : index
    %c0_17 = arith.constant 0 : index
    %25 = vector.load %arg2[%c128, %c0_17] : memref<1408x128xbf16, #tpu.memory_space<vmem>>, vector<128x128xbf16>
    %26 = arith.truncf %24 : vector<8x128xf32> to vector<8x128xbf16>
    %cst_18 = arith.constant dense<0.000000e+00> : vector<8x128xf32>
    %27 = tpu.matmul %26, %25, %cst_18 {dimension_numbers = #tpu.dot_dimension_numbers<[1], [0], [0], [1], [0, 0, 1, 1], [], []>} : vector<8x128xbf16>, vector<128x128xbf16>, vector<8x128xf32> -> vector<8x128xf32>
    %c1 = arith.constant 1 : index
    %c0_19 = arith.constant 0 : index
    %28 = vector.load %arg4[%c1, %c0_19] : memref<16x256xf32, #tpu.memory_space<vmem>>, vector<1x128xf32>
    %29 = vector.broadcast %28 : vector<1x128xf32> to vector<8x128xf32>
    %30 = arith.addf %27, %29 : vector<8x128xf32>
    %31 = vector.shape_cast %30 : vector<8x128xf32> to vector<8x1x128xf32>
    %32 = vector.broadcast %31 : vector<8x1x128xf32> to vector<8x8x128xf32>
    %33 = arith.mulf %32, %15 : vector<8x8x128xf32>
    %34 = vector.shape_cast %33 : vector<8x8x128xf32> to vector<64x128xf32>
    %c256 = arith.constant 256 : index
    %c0_20 = arith.constant 0 : index
    %35 = vector.load %arg2[%c256, %c0_20] : memref<1408x128xbf16, #tpu.memory_space<vmem>>, vector<128x128xbf16>
    %36 = arith.truncf %34 : vector<64x128xf32> to vector<64x128xbf16>
    %cst_21 = arith.constant dense<0.000000e+00> : vector<64x128xf32>
    %37 = tpu.matmul %36, %35, %cst_21 {dimension_numbers = #tpu.dot_dimension_numbers<[1], [0], [0], [1], [0, 0, 1, 1], [], []>} : vector<64x128xbf16>, vector<128x128xbf16>, vector<64x128xf32> -> vector<64x128xf32>
    %38 = vector.shape_cast %37 : vector<64x128xf32> to vector<8x8x128xf32>
    %cst_22 = arith.constant dense<0xFF800000> : vector<8x128xf32>
    %39 = vector.multi_reduction <maximumf>, %38, %cst_22 [1] : vector<8x8x128xf32> to vector<8x128xf32>
    %40 = vector.shape_cast %39 : vector<8x128xf32> to vector<8x1x128xf32>
    %41 = vector.broadcast %40 : vector<8x1x128xf32> to vector<8x8x128xf32>
    %42 = arith.subf %38, %41 : vector<8x8x128xf32>
    %43 = math.exp %42 : vector<8x8x128xf32>
    %cst_23 = arith.constant dense<0.000000e+00> : vector<8x128xf32>
    %44 = vector.multi_reduction <add>, %43, %cst_23 [1] : vector<8x8x128xf32> to vector<8x128xf32>
    %45 = vector.shape_cast %44 : vector<8x128xf32> to vector<8x1x128xf32>
    %46 = vector.broadcast %45 : vector<8x1x128xf32> to vector<8x8x128xf32>
    %47 = arith.divf %43, %46 : vector<8x8x128xf32>
    %48 = arith.mulf %47, %16 : vector<8x8x128xf32>
    %cst_24 = arith.constant dense<0.000000e+00> : vector<8x128xf32>
    %49 = vector.multi_reduction <add>, %48, %cst_24 [1] : vector<8x8x128xf32> to vector<8x128xf32>
    %c384 = arith.constant 384 : index
    %c0_25 = arith.constant 0 : index
    %50 = vector.load %arg2[%c384, %c0_25] : memref<1408x128xbf16, #tpu.memory_space<vmem>>, vector<128x128xbf16>
    %51 = arith.truncf %49 : vector<8x128xf32> to vector<8x128xbf16>
    %cst_26 = arith.constant dense<0.000000e+00> : vector<8x128xf32>
    %52 = tpu.matmul %51, %50, %cst_26 {dimension_numbers = #tpu.dot_dimension_numbers<[1], [0], [0], [1], [0, 0, 1, 1], [], []>} : vector<8x128xbf16>, vector<128x128xbf16>, vector<8x128xf32> -> vector<8x128xf32>
    %c3 = arith.constant 3 : index
    %c0_27 = arith.constant 0 : index
    %53 = vector.load %arg4[%c3, %c0_27] : memref<16x256xf32, #tpu.memory_space<vmem>>, vector<1x128xf32>
    %54 = vector.broadcast %53 : vector<1x128xf32> to vector<8x128xf32>
    %55 = arith.addf %52, %54 : vector<8x128xf32>
    %56 = arith.addf %24, %55 : vector<8x128xf32>
    %c4 = arith.constant 4 : index
    %c0_28 = arith.constant 0 : index
    %57 = vector.load %arg4[%c4, %c0_28] : memref<16x256xf32, #tpu.memory_space<vmem>>, vector<1x128xf32>
    %c5 = arith.constant 5 : index
    %c0_29 = arith.constant 0 : index
    %58 = vector.load %arg4[%c5, %c0_29] : memref<16x256xf32, #tpu.memory_space<vmem>>, vector<1x128xf32>
    %cst_30 = arith.constant dense<0.000000e+00> : vector<8xf32>
    %59 = vector.multi_reduction <add>, %56, %cst_30 [1] : vector<8x128xf32> to vector<8xf32>
    %60 = vector.shape_cast %59 : vector<8xf32> to vector<8x1xf32>
    %cst_31 = arith.constant 1.280000e+02 : f32
    %61 = vector.broadcast %cst_31 : f32 to vector<8x1xf32>
    %62 = arith.divf %60, %61 : vector<8x1xf32>
    %63 = vector.broadcast %62 : vector<8x1xf32> to vector<8x128xf32>
    %64 = arith.subf %56, %63 : vector<8x128xf32>
    %65 = arith.mulf %64, %64 : vector<8x128xf32>
    %cst_32 = arith.constant dense<0.000000e+00> : vector<8xf32>
    %66 = vector.multi_reduction <add>, %65, %cst_32 [1] : vector<8x128xf32> to vector<8xf32>
    %67 = vector.shape_cast %66 : vector<8xf32> to vector<8x1xf32>
    %cst_33 = arith.constant 1.280000e+02 : f32
    %68 = vector.broadcast %cst_33 : f32 to vector<8x1xf32>
    %69 = arith.divf %67, %68 : vector<8x1xf32>
    %70 = vector.broadcast %62 : vector<8x1xf32> to vector<8x128xf32>
    %71 = arith.subf %56, %70 : vector<8x128xf32>
    %cst_34 = arith.constant 9.99999974E-6 : f32
    %72 = vector.broadcast %cst_34 : f32 to vector<8x1xf32>
    %73 = arith.addf %69, %72 : vector<8x1xf32>
    %74 = math.rsqrt %73 : vector<8x1xf32>
    %75 = vector.broadcast %74 : vector<8x1xf32> to vector<8x128xf32>
    %76 = arith.mulf %71, %75 : vector<8x128xf32>
    %77 = vector.broadcast %57 : vector<1x128xf32> to vector<8x128xf32>
    %78 = arith.mulf %76, %77 : vector<8x128xf32>
    %79 = vector.broadcast %58 : vector<1x128xf32> to vector<8x128xf32>
    %80 = arith.addf %78, %79 : vector<8x128xf32>
    %c0_35 = arith.constant 0 : index
    %c256_36 = arith.constant 256 : index
    %81 = vector.load %arg3[%c0_35, %c256_36] : memref<128x512xbf16, #tpu.memory_space<vmem>>, vector<128x256xbf16>
    %82 = arith.truncf %80 : vector<8x128xf32> to vector<8x128xbf16>
    %cst_37 = arith.constant dense<0.000000e+00> : vector<8x256xf32>
    %83 = tpu.matmul %82, %81, %cst_37 {dimension_numbers = #tpu.dot_dimension_numbers<[1], [0], [0], [1], [0, 0, 1, 1], [], []>} : vector<8x128xbf16>, vector<128x256xbf16>, vector<8x256xf32> -> vector<8x256xf32>
    %c6 = arith.constant 6 : index
    %c0_38 = arith.constant 0 : index
    %84 = vector.load %arg4[%c6, %c0_38] : memref<16x256xf32, #tpu.memory_space<vmem>>, vector<1x256xf32>
    %85 = vector.broadcast %84 : vector<1x256xf32> to vector<8x256xf32>
    %86 = arith.addf %83, %85 : vector<8x256xf32>
    %cst_39 = arith.constant 0.000000e+00 : f32
    %87 = vector.broadcast %cst_39 : f32 to vector<8x256xf32>
    %88 = arith.maximumf %86, %87 : vector<8x256xf32>
    %c1152 = arith.constant 1152 : index
    %c0_40 = arith.constant 0 : index
    %89 = vector.load %arg2[%c1152, %c0_40] : memref<1408x128xbf16, #tpu.memory_space<vmem>>, vector<256x128xbf16>
    %90 = arith.truncf %88 : vector<8x256xf32> to vector<8x256xbf16>
    %cst_41 = arith.constant dense<0.000000e+00> : vector<8x128xf32>
    %91 = tpu.matmul %90, %89, %cst_41 {dimension_numbers = #tpu.dot_dimension_numbers<[1], [0], [0], [1], [0, 0, 1, 1], [], []>} : vector<8x256xbf16>, vector<256x128xbf16>, vector<8x128xf32> -> vector<8x128xf32>
    %c7_42 = arith.constant 7 : index
    %c0_43 = arith.constant 0 : index
    %92 = vector.load %arg4[%c7_42, %c0_43] : memref<16x256xf32, #tpu.memory_space<vmem>>, vector<1x128xf32>
    %93 = vector.broadcast %92 : vector<1x128xf32> to vector<8x128xf32>
    %94 = arith.addf %91, %93 : vector<8x128xf32>
    %95 = arith.addf %80, %94 : vector<8x128xf32>
    %c8 = arith.constant 8 : index
    %c0_44 = arith.constant 0 : index
    %96 = vector.load %arg4[%c8, %c0_44] : memref<16x256xf32, #tpu.memory_space<vmem>>, vector<1x128xf32>
    %c9 = arith.constant 9 : index
    %c0_45 = arith.constant 0 : index
    %97 = vector.load %arg4[%c9, %c0_45] : memref<16x256xf32, #tpu.memory_space<vmem>>, vector<1x128xf32>
    %cst_46 = arith.constant dense<0.000000e+00> : vector<8xf32>
    %98 = vector.multi_reduction <add>, %95, %cst_46 [1] : vector<8x128xf32> to vector<8xf32>
    %99 = vector.shape_cast %98 : vector<8xf32> to vector<8x1xf32>
    %cst_47 = arith.constant 1.280000e+02 : f32
    %100 = vector.broadcast %cst_47 : f32 to vector<8x1xf32>
    %101 = arith.divf %99, %100 : vector<8x1xf32>
    %102 = vector.broadcast %101 : vector<8x1xf32> to vector<8x128xf32>
    %103 = arith.subf %95, %102 : vector<8x128xf32>
    %104 = arith.mulf %103, %103 : vector<8x128xf32>
    %cst_48 = arith.constant dense<0.000000e+00> : vector<8xf32>
    %105 = vector.multi_reduction <add>, %104, %cst_48 [1] : vector<8x128xf32> to vector<8xf32>
    %106 = vector.shape_cast %105 : vector<8xf32> to vector<8x1xf32>
    %cst_49 = arith.constant 1.280000e+02 : f32
    %107 = vector.broadcast %cst_49 : f32 to vector<8x1xf32>
    %108 = arith.divf %106, %107 : vector<8x1xf32>
    %109 = vector.broadcast %101 : vector<8x1xf32> to vector<8x128xf32>
    %110 = arith.subf %95, %109 : vector<8x128xf32>
    %cst_50 = arith.constant 9.99999974E-6 : f32
    %111 = vector.broadcast %cst_50 : f32 to vector<8x1xf32>
    %112 = arith.addf %108, %111 : vector<8x1xf32>
    %113 = math.rsqrt %112 : vector<8x1xf32>
    %114 = vector.broadcast %113 : vector<8x1xf32> to vector<8x128xf32>
    %115 = arith.mulf %110, %114 : vector<8x128xf32>
    %116 = vector.broadcast %96 : vector<1x128xf32> to vector<8x128xf32>
    %117 = arith.mulf %115, %116 : vector<8x128xf32>
    %118 = vector.broadcast %97 : vector<1x128xf32> to vector<8x128xf32>
    %119 = arith.addf %117, %118 : vector<8x128xf32>
    %c512 = arith.constant 512 : index
    %c0_51 = arith.constant 0 : index
    %120 = vector.load %arg2[%c512, %c0_51] : memref<1408x128xbf16, #tpu.memory_space<vmem>>, vector<128x128xbf16>
    %121 = arith.truncf %119 : vector<8x128xf32> to vector<8x128xbf16>
    %cst_52 = arith.constant dense<0.000000e+00> : vector<8x128xf32>
    %122 = tpu.matmul %121, %120, %cst_52 {dimension_numbers = #tpu.dot_dimension_numbers<[1], [0], [0], [1], [0, 0, 1, 1], [], []>} : vector<8x128xbf16>, vector<128x128xbf16>, vector<8x128xf32> -> vector<8x128xf32>
    %c10 = arith.constant 10 : index
    %c0_53 = arith.constant 0 : index
    %123 = vector.load %arg4[%c10, %c0_53] : memref<16x256xf32, #tpu.memory_space<vmem>>, vector<1x128xf32>
    %124 = vector.broadcast %123 : vector<1x128xf32> to vector<8x128xf32>
    %125 = arith.addf %122, %124 : vector<8x128xf32>
    %126 = math.tanh %125 : vector<8x128xf32>
    %c640 = arith.constant 640 : index
    %c0_54 = arith.constant 0 : index
    %127 = vector.load %arg2[%c640, %c0_54] : memref<1408x128xbf16, #tpu.memory_space<vmem>>, vector<128x128xbf16>
    %128 = arith.truncf %126 : vector<8x128xf32> to vector<8x128xbf16>
    %cst_55 = arith.constant dense<0.000000e+00> : vector<8x128xf32>
    %129 = tpu.matmul %128, %127, %cst_55 {dimension_numbers = #tpu.dot_dimension_numbers<[1], [0], [0], [1], [0, 0, 1, 1], [], []>} : vector<8x128xbf16>, vector<128x128xbf16>, vector<8x128xf32> -> vector<8x128xf32>
    %c11 = arith.constant 11 : index
    %c0_56 = arith.constant 0 : index
    %130 = vector.load %arg4[%c11, %c0_56] : memref<16x256xf32, #tpu.memory_space<vmem>>, vector<1x128xf32>
    %131 = vector.broadcast %130 : vector<1x128xf32> to vector<8x128xf32>
    %132 = arith.addf %129, %131 : vector<8x128xf32>
    %133 = math.tanh %132 : vector<8x128xf32>
    %c768 = arith.constant 768 : index
    %c0_57 = arith.constant 0 : index
    %134 = vector.load %arg2[%c768, %c0_57] : memref<1408x128xbf16, #tpu.memory_space<vmem>>, vector<128x128xbf16>
    %135 = arith.truncf %133 : vector<8x128xf32> to vector<8x128xbf16>
    %cst_58 = arith.constant dense<0.000000e+00> : vector<8x128xf32>
    %136 = tpu.matmul %135, %134, %cst_58 {dimension_numbers = #tpu.dot_dimension_numbers<[1], [0], [0], [1], [0, 0, 1, 1], [], []>} : vector<8x128xbf16>, vector<128x128xbf16>, vector<8x128xf32> -> vector<8x128xf32>
    %c12 = arith.constant 12 : index
    %c0_59 = arith.constant 0 : index
    %137 = vector.load %arg4[%c12, %c0_59] : memref<16x256xf32, #tpu.memory_space<vmem>>, vector<1x128xf32>
    %138 = vector.broadcast %137 : vector<1x128xf32> to vector<8x128xf32>
    %139 = arith.addf %136, %138 : vector<8x128xf32>
    %c896 = arith.constant 896 : index
    %c0_60 = arith.constant 0 : index
    %140 = vector.load %arg2[%c896, %c0_60] : memref<1408x128xbf16, #tpu.memory_space<vmem>>, vector<128x128xbf16>
    %141 = arith.truncf %139 : vector<8x128xf32> to vector<8x128xbf16>
    %cst_61 = arith.constant dense<0.000000e+00> : vector<8x128xf32>
    %142 = tpu.matmul %141, %140, %cst_61 {dimension_numbers = #tpu.dot_dimension_numbers<[1], [0], [0], [1], [0, 0, 1, 1], [], []>} : vector<8x128xbf16>, vector<128x128xbf16>, vector<8x128xf32> -> vector<8x128xf32>
    %c13 = arith.constant 13 : index
    %c0_62 = arith.constant 0 : index
    %143 = vector.load %arg4[%c13, %c0_62] : memref<16x256xf32, #tpu.memory_space<vmem>>, vector<1x128xf32>
    %144 = vector.broadcast %143 : vector<1x128xf32> to vector<8x128xf32>
    %145 = arith.addf %142, %144 : vector<8x128xf32>
    %cst_63 = arith.constant 0.000000e+00 : f32
    %146 = vector.broadcast %cst_63 : f32 to vector<8x128xf32>
    %147 = arith.maximumf %145, %146 : vector<8x128xf32>
    %c1024 = arith.constant 1024 : index
    %c0_64 = arith.constant 0 : index
    %148 = vector.load %arg2[%c1024, %c0_64] : memref<1408x128xbf16, #tpu.memory_space<vmem>>, vector<128x128xbf16>
    %149 = arith.truncf %147 : vector<8x128xf32> to vector<8x128xbf16>
    %cst_65 = arith.constant dense<0.000000e+00> : vector<8x128xf32>
    %150 = tpu.matmul %149, %148, %cst_65 {dimension_numbers = #tpu.dot_dimension_numbers<[1], [0], [0], [1], [0, 0, 1, 1], [], []>} : vector<8x128xbf16>, vector<128x128xbf16>, vector<8x128xf32> -> vector<8x128xf32>
    %c14 = arith.constant 14 : index
    %c0_66 = arith.constant 0 : index
    %151 = vector.load %arg4[%c14, %c0_66] : memref<16x256xf32, #tpu.memory_space<vmem>>, vector<1x128xf32>
    %152 = vector.broadcast %151 : vector<1x128xf32> to vector<8x128xf32>
    %153 = arith.addf %150, %152 : vector<8x128xf32>
    %c0_67 = arith.constant 0 : index
    %c0_68 = arith.constant 0 : index
    %154 = vector.load %arg5[%c0_67, %c0_68] : memref<8x256xf32, #tpu.memory_space<vmem>>, vector<8x128xf32>
    tpu.vector_store %arg5[%c0_67, %c0_68], %139 {strides = array<i32>} : memref<8x256xf32, #tpu.memory_space<vmem>>, vector<8x128xf32>,
    %c0_69 = arith.constant 0 : index
    %c128_70 = arith.constant 128 : index
    %155 = vector.load %arg5[%c0_69, %c128_70] : memref<8x256xf32, #tpu.memory_space<vmem>>, vector<8x128xf32>
    tpu.vector_store %arg5[%c0_69, %c128_70], %153 {strides = array<i32>} : memref<8x256xf32, #tpu.memory_space<vmem>>, vector<8x128xf32>,
    return
  }
  func.func @transform_0(%arg0: i32) -> (i32, i32, i32) {
    %c0_i32 = arith.constant 0 : i32
    %c0_i32_0 = arith.constant 0 : i32
    %c0_i32_1 = arith.constant 0 : i32
    return %arg0, %c0_i32, %c0_i32_0 : i32, i32, i32
  }
  func.func @transform_1(%arg0: i32) -> (i32, i32) {
    %c0_i32 = arith.constant 0 : i32
    %c0_i32_0 = arith.constant 0 : i32
    %c0_i32_1 = arith.constant 0 : i32
    return %c0_i32, %c0_i32_0 : i32, i32
  }
  func.func @transform_2(%arg0: i32) -> (i32, i32) {
    %c0_i32 = arith.constant 0 : i32
    %c0_i32_0 = arith.constant 0 : i32
    %c0_i32_1 = arith.constant 0 : i32
    return %c0_i32, %c0_i32_0 : i32, i32
  }
  func.func @transform_3(%arg0: i32) -> (i32, i32) {
    %c0_i32 = arith.constant 0 : i32
    %c0_i32_0 = arith.constant 0 : i32
    %c0_i32_1 = arith.constant 0 : i32
    return %c0_i32, %c0_i32_0 : i32, i32
  }
  func.func @transform_4(%arg0: i32) -> (i32, i32) {
    %c0_i32 = arith.constant 0 : i32
    %c0_i32_0 = arith.constant 0 : i32
    return %arg0, %c0_i32 : i32, i32
  }
}

</mosaic_0001>

<llo_original>
// kernel: tpu_custom_call.1
$region0: #{tpu_custom_call.1}
  #allocation0 [shape = 'u32[]', space=smem, size = 0x4, offset = 0x4, fixed_abs, tag = 'smem constant byte address 0x4 - core index']
  #allocation1 [shape = 'u32[144,128]{1,0:T(1,128)}', space=vmem, size = 0x12000, scoped, tag = 'internal scratch']
  %s0 = inlined_call_operand.hbm [shape: f32[16,8,128], index: 0, kind: input, shape index: {}]
  %s1 = inlined_call_operand.hbm [shape: bf16[1408,128], index: 1, kind: input, shape index: {}]
  %s2 = inlined_call_operand.hbm [shape: bf16[128,512], index: 2, kind: input, shape index: {}]
  %s3 = inlined_call_operand.hbm [shape: f32[16,256], index: 3, kind: input, shape index: {}]
  %s4 = inlined_call_operand.hbm [shape: f32[16,256], index: 4, kind: output, shape index: {}]
  %s5 = sld [smem:[#allocation0]]
  $region65: #{tpu_custom_call.1} parent=0
    _
  %s7 = ssub.s32 1, %s5
  %s8 = scalar_select 0, %s7, %s5
  $region1: #{tpu_custom_call.1} parent=0
    #allocation2 [shape = 'u8[65536]{0}', space=vmem, size = 0x10000, scoped, tag = 'input window, operand 0']
    #allocation3 [shape = 's32[2]{0}', space=sflag, size = 0x8, scoped, tag = 'scoped memory for tpu_custom_call.1']
    #allocation4 [shape = 's32[2]{0}', space=sflag, size = 0x8, scoped, tag = 'scoped memory for tpu_custom_call.1']
    #allocation5 [shape = 'u8[360448]{0}', space=vmem, size = 0x58000, scoped, tag = 'input window, operand 1, single buffered']
    #allocation6 [shape = 's32[1]{0}', space=sflag, size = 0x4, scoped, tag = 'scoped memory for tpu_custom_call.1']
    #allocation7 [shape = 'u8[131072]{0}', space=vmem, size = 0x20000, scoped, tag = 'input window, operand 2, single buffered']
    #allocation8 [shape = 'u8[16384]{0}', space=vmem, size = 0x4000, scoped, tag = 'input window, operand 3, single buffered']
    #allocation9 [shape = 's32[1]{0}', space=sflag, size = 0x4, scoped, tag = 'scoped memory for tpu_custom_call.1']
    #allocation10 [shape = 'u8[16384]{0}', space=vmem, size = 0x4000, scoped, tag = 'output window, operand 0']
    %9 = vsyncpa [#allocation3], 0
    %s10 = scalar_lea.sflag [#allocation3], 1
    %11 = vsyncpa %s10, 0
    %12 = vsyncpa [#allocation6], 0
    %13 = vsyncpa [#allocation9], 0
    %14 = vsyncpa [#allocation4], 0
    %s15 = scalar_lea.sflag [#allocation4], 1
    %16 = vsyncpa %s15, 0
    loop: start=0, step=1, limit=4
    $region2: #{tpu_custom_call.1} parent=1 // loop_pre_header
      _
    $region3: #{tpu_custom_call.1} parent=1 // loop_header
      %s18 = sphi 0, %s22
      %p19 = scmp.ge.s32.totalorder %s18, 4
      %s28 = sphi 0, %s30
      %s31 = sphi 0, %s28
      %s32 = sphi 0, %s31
      %s48 = sphi 0, %s32
      %s52 = sphi 0, %s52
      %s54 = sphi 0, %s52
      %s55 = sphi 0, %s54
      %s69 = sphi 0, %s55
      %s73 = sphi 0, %s73
      %s75 = sphi 0, %s73
      %s76 = sphi 0, %s75
      %s90 = sphi 0, %s76
      %s94 = sphi 0, %s94
      %s96 = sphi 0, %s94
      %s97 = sphi 0, %s96
      %s111 = sphi 0, %s97
      %s117 = sphi 0, %s119
      %s120 = sphi 0, %s117
      %s121 = sphi 0, %s120
      %s137 = sphi 0, %s121
    $region4: #{tpu_custom_call.1} parent=1 // loop_header_branch
      %21 = sbr.rel (%p19) target = $region8
    $region5: #{tpu_custom_call.1} parent=1 // loop_body
      %s23 = ssub.s32 %s18, 1
      %s24 = ssub.s32 %s18, 2
      %s25 = sadd.s32 %s18, 1
      %s26 = ssub.s32 %s18, %s25
      %p27 = scmp.eq.s32.totalorder %s26, 0
      %s29 = sadd.s32 %s28, 1
      %s30 = scalar_select %p27, %s28, %s29
      %p33 = pneg %p27
      %p34 = scmp.eq.s32.totalorder %s18, 1
      %p35 = por %p33, %p34
      %p36 = scmp.ne.s32.totalorder %s28, %s31
      %p37 = scmp.eq.s32.totalorder %s18, 0
      %p38 = por %p36, %p37
      %p39 = scmp.ne.s32.totalorder %s28, %s31
      %p40 = scmp.eq.s32.totalorder %s23, 1
      %p41 = por %p39, %p40
      %p42 = scmp.ne.s32.totalorder %s31, %s32
      %p43 = scmp.eq.s32.totalorder %s23, 0
      %p44 = por %p42, %p43
      %p45 = scmp.ne.s32.totalorder %s31, %s32
      %p46 = scmp.eq.s32.totalorder %s24, 1
      %p47 = por %p45, %p46
      %p49 = scmp.ne.s32.totalorder %s32, %s48
      %p50 = scmp.eq.s32.totalorder %s24, 0
      %p51 = por %p49, %p50
      %s53 = sadd.s32 %s52, 1
      %p56 = scmp.eq.s32.totalorder %s18, 1
      %p57 = scmp.ne.s32.totalorder %s52, %s54
      %p58 = scmp.eq.s32.totalorder %s18, 0
      %p59 = por %p57, %p58
      %p60 = scmp.ne.s32.totalorder %s52, %s54
      %p61 = scmp.eq.s32.totalorder %s23, 1
      %p62 = por %p60, %p61
      %p63 = scmp.ne.s32.totalorder %s54, %s55
      %p64 = scmp.eq.s32.totalorder %s23, 0
      %p65 = por %p63, %p64
      %p66 = scmp.ne.s32.totalorder %s54, %s55
      %p67 = scmp.eq.s32.totalorder %s24, 1
      %p68 = por %p66, %p67
      %p70 = scmp.ne.s32.totalorder %s55, %s69
      %p71 = scmp.eq.s32.totalorder %s24, 0
      %p72 = por %p70, %p71
      %s74 = sadd.s32 %s73, 1
      %p77 = scmp.eq.s32.totalorder %s18, 1
      %p78 = scmp.ne.s32.totalorder %s73, %s75
      %p79 = scmp.eq.s32.totalorder %s18, 0
      %p80 = por %p78, %p79
      %p81 = scmp.ne.s32.totalorder %s73, %s75
      %p82 = scmp.eq.s32.totalorder %s23, 1
      %p83 = por %p81, %p82
      %p84 = scmp.ne.s32.totalorder %s75, %s76
      %p85 = scmp.eq.s32.totalorder %s23, 0
      %p86 = por %p84, %p85
      %p87 = scmp.ne.s32.totalorder %s75, %s76
      %p88 = scmp.eq.s32.totalorder %s24, 1
      %p89 = por %p87, %p88
      %p91 = scmp.ne.s32.totalorder %s76, %s90
      %p92 = scmp.eq.s32.totalorder %s24, 0
      %p93 = por %p91, %p92
      %s95 = sadd.s32 %s94, 1
      %p98 = scmp.eq.s32.totalorder %s18, 1
      %p99 = scmp.ne.s32.totalorder %s94, %s96
      %p100 = scmp.eq.s32.totalorder %s18, 0
      %p101 = por %p99, %p100
      %p102 = scmp.ne.s32.totalorder %s94, %s96
      %p103 = scmp.eq.s32.totalorder %s23, 1
      %p104 = por %p102, %p103
      %p105 = scmp.ne.s32.totalorder %s96, %s97
      %p106 = scmp.eq.s32.totalorder %s23, 0
      %p107 = por %p105, %p106
      %p108 = scmp.ne.s32.totalorder %s96, %s97
      %p109 = scmp.eq.s32.totalorder %s24, 1
      %p110 = por %p108, %p109
      %p112 = scmp.ne.s32.totalorder %s97, %s111
      %p113 = scmp.eq.s32.totalorder %s24, 0
      %p114 = por %p112, %p113
      %s115 = ssub.s32 %s18, %s25
      %p116 = scmp.eq.s32.totalorder %s115, 0
      %s118 = sadd.s32 %s117, 1
      %s119 = scalar_select %p116, %s117, %s118
      %p122 = pneg %p116
      %p123 = scmp.eq.s32.totalorder %s18, 1
      %p124 = por %p122, %p123
      %p125 = scmp.ne.s32.totalorder %s117, %s120
      %p126 = scmp.eq.s32.totalorder %s18, 0
      %p127 = por %p125, %p126
      %p128 = scmp.ne.s32.totalorder %s117, %s120
      %p129 = scmp.eq.s32.totalorder %s23, 1
      %p130 = por %p128, %p129
      %p131 = scmp.ne.s32.totalorder %s120, %s121
      %p132 = scmp.eq.s32.totalorder %s23, 0
      %p133 = por %p131, %p132
      %p134 = scmp.ne.s32.totalorder %s120, %s121
      %p135 = scmp.eq.s32.totalorder %s24, 1
      %p136 = por %p134, %p135
      %p138 = scmp.ne.s32.totalorder %s121, %s137
      %p139 = scmp.eq.s32.totalorder %s24, 0
      %p140 = por %p138, %p139
      %p141 = scmp.le.s32.totalorder 1, %s18
      %p142 = scmp.lt.s32.totalorder %s18, 3
      %p143 = pnand %p141, %p142
      %p144 = pneg %p143
      // Predicated region
      $region9: #{tpu_custom_call.1} parent=5 // pred_check
        _
      $region10: #{tpu_custom_call.1} parent=5 // pred_check_branch
        %146 = sbr.rel (%p143) target = $region12
      $region11: #{tpu_custom_call.1} parent=5 // pred_region
        %s147 = ssub.s32 %s18, 1
        // Predicated region
        $region13: #{tpu_custom_call.1} parent=11 // pred_check
          %p148 = pneg %p65
        $region14: #{tpu_custom_call.1} parent=11 // pred_check_branch
          %150 = sbr.rel (%p148) target = $region16
        $region15: #{tpu_custom_call.1} parent=11 // pred_region
          %s152 = ssub.s32 11264, 11264
          %153 = vsyncadd [#allocation6], %s152
          %s154 = sshll.u32 [#allocation5], 4
          %s155 = int_to_ptr.vmem [resolvable:$true] %s154
          %160 = dma.hbm_to_vmem [thread:$0]  %s1, 11264, %s155, [#allocation6], 64, 64, 4
        $region16: #{tpu_custom_call.1} parent=11 // pred_fallthru
          _
        // Predicated region
        $region17: #{tpu_custom_call.1} parent=11 // pred_check
          %p161 = pneg %p86
        $region18: #{tpu_custom_call.1} parent=11 // pred_check_branch
          %163 = sbr.rel (%p161) target = $region20
        $region19: #{tpu_custom_call.1} parent=11 // pred_region
          %s165 = ssub.s32 4096, 4096
          %166 = vsyncadd [#allocation6], %s165
          %s167 = sshll.u32 [#allocation7], 4
          %s168 = int_to_ptr.vmem [resolvable:$true] %s167
          %173 = dma.hbm_to_vmem [thread:$0]  %s2, 4096, %s168, [#allocation6], 256, 256, 16
        $region20: #{tpu_custom_call.1} parent=11 // pred_fallthru
          _
        // Predicated region
        $region21: #{tpu_custom_call.1} parent=11 // pred_check
          %p174 = pneg %p107
        $region22: #{tpu_custom_call.1} parent=11 // pred_check_branch
          %176 = sbr.rel (%p174) target = $region24
        $region23: #{tpu_custom_call.1} parent=11 // pred_region
          %s178 = ssub.s32 512, 512
          %179 = vsyncadd [#allocation9], %s178
          %s180 = sshll.u32 [#allocation8], 4
          %s181 = int_to_ptr.vmem [resolvable:$true] %s180
          %186 = dma.hbm_to_vmem [thread:$0]  %s3, 512, %s181, [#allocation9], 256, 256, 16
        $region24: #{tpu_custom_call.1} parent=11 // pred_fallthru
          _
      $region12: #{tpu_custom_call.1} parent=5 // pred_fallthru
        _
      %p187 = scmp.lt.s32.totalorder %s18, 2
      // Predicated region
      $region25: #{tpu_custom_call.1} parent=5 // pred_check
        %p188 = pneg %p187
      $region26: #{tpu_custom_call.1} parent=5 // pred_check_branch
        %190 = sbr.rel (%p188) target = $region28
      $region27: #{tpu_custom_call.1} parent=5 // pred_region
        // Predicated region
        $region29: #{tpu_custom_call.1} parent=27 // pred_check
          %p191 = pneg %p38
        $region30: #{tpu_custom_call.1} parent=27 // pred_check_branch
          %193 = sbr.rel (%p191) target = $region32
        $region31: #{tpu_custom_call.1} parent=27 // pred_region
          %s194 = sand.u32 %s28, 1
          %s195 = scalar_lea.sflag [#allocation3], %s194
          %s196 = sand.u32 %s28, 1
          %s197 = smul.addr %s196, 64
          %s198 = scalar_lea.vmem [#allocation2], %s197
          %s199 = smul.u32 8, %s18
          %s201 = ssub.s32 1024, 1024
          %202 = vsyncadd %s195, %s201
          %s203 = smul.addr %s199, 128
          %s204 = scalar_lea.hbm %s0, %s203
          %s205 = sshll.u32 %s198, 4
          %s206 = int_to_ptr.vmem [resolvable:$true] %s205
          %211 = dma.hbm_to_vmem [thread:$0]  %s204, 1024, %s206, %s195, 128, 128, 8
        $region32: #{tpu_custom_call.1} parent=27 // pred_fallthru
          _
      $region28: #{tpu_custom_call.1} parent=5 // pred_fallthru
        _
      %p212 = scmp.le.s32.totalorder 1, %s18
      %p213 = scmp.lt.s32.totalorder %s18, 3
      %p214 = pnand %p212, %p213
      %p215 = pneg %p214
      // Predicated region
      $region33: #{tpu_custom_call.1} parent=5 // pred_check
        _
      $region34: #{tpu_custom_call.1} parent=5 // pred_check_branch
        %217 = sbr.rel (%p214) target = $region36
      $region35: #{tpu_custom_call.1} parent=5 // pred_region
        %s218 = ssub.s32 %s18, 1
        %s219 = sand.u32 %s31, 1
        %s220 = scalar_lea.sflag [#allocation3], %s219
        %s221 = sand.u32 %s31, 1
        %s222 = smul.addr %s221, 64
        %s223 = scalar_lea.vmem [#allocation2], %s222
        // Predicated region
        $region37: #{tpu_custom_call.1} parent=35 // pred_check
          %p224 = pneg %p44
        $region38: #{tpu_custom_call.1} parent=35 // pred_check_branch
          %226 = sbr.rel (%p224) target = $region40
        $region39: #{tpu_custom_call.1} parent=35 // pred_region
          %227 = dma.done %s220, 1024
        $region40: #{tpu_custom_call.1} parent=35 // pred_fallthru
          _
        // Predicated region
        $region41: #{tpu_custom_call.1} parent=35 // pred_check
          %p228 = pneg %p65
        $region42: #{tpu_custom_call.1} parent=35 // pred_check_branch
          %230 = sbr.rel (%p228) target = $region44
        $region43: #{tpu_custom_call.1} parent=35 // pred_region
          %231 = dma.done [#allocation6], 11264
        $region44: #{tpu_custom_call.1} parent=35 // pred_fallthru
          _
        // Predicated region
        $region45: #{tpu_custom_call.1} parent=35 // pred_check
          %p232 = pneg %p86
        $region46: #{tpu_custom_call.1} parent=35 // pred_check_branch
          %234 = sbr.rel (%p232) target = $region48
        $region47: #{tpu_custom_call.1} parent=35 // pred_region
          %235 = dma.done [#allocation6], 4096
        $region48: #{tpu_custom_call.1} parent=35 // pred_fallthru
          _
        // Predicated region
        $region49: #{tpu_custom_call.1} parent=35 // pred_check
          %p236 = pneg %p107
        $region50: #{tpu_custom_call.1} parent=35 // pred_check_branch
          %238 = sbr.rel (%p236) target = $region52
        $region51: #{tpu_custom_call.1} parent=35 // pred_region
          %239 = dma.done [#allocation9], 512
        $region52: #{tpu_custom_call.1} parent=35 // pred_fallthru
          _
        %s240 = sand.u32 %s31, 1
        %s241 = scalar_lea.sflag [#allocation3], %s240
        %s242 = sand.u32 %s31, 1
        %s243 = smul.addr %s242, 64
        %s244 = scalar_lea.vmem [#allocation2], %s243
        %p245 = pneg %p44
        %p246 = pneg %p41
        %p247 = pneg %p65
        %p248 = pneg %p62
        %p249 = pneg %p86
        %p250 = pneg %p83
        %p251 = pneg %p107
        %p252 = pneg %p104
        %p253 = pneg %p133
        %p254 = pneg %p130
        %s255 = sand.u32 %s120, 1
        %s256 = scalar_lea.sflag [#allocation4], %s255
        %s257 = sand.u32 %s120, 1
        %s258 = smul.addr %s257, 16
        %s259 = scalar_lea.vmem [#allocation10], %s258
        %s260 = smul.u32 8, %s23
        %v262 = vld [vmem:[%s223] sm:$0xff]
        %v263 = vld [vmem:[%s223 + $0x8] sm:$0xff]
        %v264 = vld [vmem:[%s223 + $0x10] sm:$0xff]
        %v265 = vld [vmem:[%s223 + $0x18] sm:$0xff]
        %v266 = vld [vmem:[%s223 + $0x20] sm:$0xff]
        %v267 = vld [vmem:[%s223 + $0x28] sm:$0xff]
        %v268 = vld [vmem:[%s223 + $0x30] sm:$0xff]
        %v269 = vld [vmem:[%s223 + $0x38] sm:$0xff]
        %v270 = vld [vmem:[#allocation5] sm:$0xf]
        %v271 = vld [vmem:[#allocation5 + $0x4] sm:$0xf]
        %v272 = vld [vmem:[#allocation5 + $0x8] sm:$0xf]
        %v273 = vld [vmem:[#allocation5 + $0xc] sm:$0xf]
        %v274 = vld [vmem:[#allocation5 + $0x10] sm:$0xf]
        %v275 = vld [vmem:[#allocation5 + $0x14] sm:$0xf]
        %v276 = vld [vmem:[#allocation5 + $0x18] sm:$0xf]
        %v277 = vld [vmem:[#allocation5 + $0x1c] sm:$0xf]
        %v278 = vld [vmem:[#allocation5 + $0x20] sm:$0xf]
        %v279 = vld [vmem:[#allocation5 + $0x24] sm:$0xf]
        %v280 = vld [vmem:[#allocation5 + $0x28] sm:$0xf]
        %v281 = vld [vmem:[#allocation5 + $0x2c] sm:$0xf]
        %v282 = vld [vmem:[#allocation5 + $0x30] sm:$0xf]
        %v283 = vld [vmem:[#allocation5 + $0x34] sm:$0xf]
        %v284 = vld [vmem:[#allocation5 + $0x38] sm:$0xf]
        %v285 = vld [vmem:[#allocation5 + $0x3c] sm:$0xf]
        %v286 = vpack.c.bf16 %v263, %v262
        %v287 = vpack.c.bf16 %v265, %v264
        %v288 = vpack.c.bf16 %v267, %v266
        %v289 = vpack.c.bf16 %v269, %v268
        %v290 = vld [vmem:[#allocation8] ss:$0 sm:$0xff]
        %v307 = vunpack.c.l.b16 %v270
        %v308 = vunpack.c.l.b16 %v271
        %v309 = vunpack.c.l.b16 %v272
        %v310 = vunpack.c.l.b16 %v273
        %v311 = vunpack.c.l.b16 %v274
        %v312 = vunpack.c.l.b16 %v275
        %v313 = vunpack.c.l.b16 %v276
        %v314 = vunpack.c.l.b16 %v277
        %v315 = vunpack.c.l.b16 %v278
        %v316 = vunpack.c.l.b16 %v279
        %v317 = vunpack.c.l.b16 %v280
        %v318 = vunpack.c.l.b16 %v281
        %v319 = vunpack.c.l.b16 %v282
        %v320 = vunpack.c.l.b16 %v283
        %v321 = vunpack.c.l.b16 %v284
        %v322 = vunpack.c.l.b16 %v285
        %v323 = vpack.c.b16 %v308, %v307
        %v324 = vpack.c.b16 %v310, %v309
        %v325 = vpack.c.b16 %v312, %v311
        %v326 = vpack.c.b16 %v314, %v313
        %v327 = vpack.c.b16 %v316, %v315
        %v328 = vpack.c.b16 %v318, %v317
        %v329 = vpack.c.b16 %v320, %v319
        %v330 = vpack.c.b16 %v322, %v321
        %339 = vmatprep.subr.bf16.mxu0 0
        %340 = vmatpush1.bf16.msra.mxu0 %v330
        %341 = vmatprep.subr.bf16.mxu0 0
        %342 = vmatpush1.bf16.msra.mxu0 %v329
        %343 = vmatprep.subr.bf16.mxu0 0
        %344 = vmatpush1.bf16.msra.mxu0 %v328
        %345 = vmatprep.subr.bf16.mxu0 0
        %346 = vmatpush1.bf16.msra.mxu0 %v327
        %347 = vmatprep.subr.bf16.mxu0 0
        %348 = vmatpush1.bf16.msra.mxu0 %v326
        %349 = vmatprep.subr.bf16.mxu0 0
        %350 = vmatpush1.bf16.msra.mxu0 %v325
        %351 = vmatprep.subr.bf16.mxu0 0
        %352 = vmatpush1.bf16.msra.mxu0 %v324
        %353 = vmatprep.subr.bf16.mxu0 0
        %354 = vmatpush1.bf16.msra.mxu0 %v323
        %355 = vmatprep.subr.bf16.mxu0 0
        %356 = vmatpush2.bf16.msra.mxu0 0
        %357 = vmatprep.subr.bf16.mxu0 0
        %358 = vmatpush2.bf16.msra.mxu0 0
        %359 = vmatprep.subr.bf16.mxu0 0
        %360 = vmatpush2.bf16.msra.mxu0 0
        %361 = vmatprep.subr.bf16.mxu0 0
        %362 = vmatpush2.bf16.msra.mxu0 0
        %363 = vmatprep.subr.bf16.mxu0 0
        %364 = vmatpush2.bf16.msra.mxu0 0
        %365 = vmatprep.subr.bf16.mxu0 0
        %366 = vmatpush2.bf16.msra.mxu0 0
        %367 = vmatprep.subr.bf16.mxu0 0
        %368 = vmatpush2.bf16.msra.mxu0 0
        %369 = vmatprep.subr.bf16.mxu0 0
        %370 = vmatpush2.bf16.msra.mxu0 0
        %371 = vmatprep.mubr.bf16.mxu0 0
        %372 = vmatmul.mubr.bf16.gmra.mxu0 %v286
        %v373 = vpop.f32.mrf.mxu0
        %v374 = vadd.f32 %v290, %v373
        %v375 = vpop.f32.mrf.mxu0
        %v376 = vpop.f32.mrf.mxu0
        %v377 = vadd.f32 %v290, %v376
        %v378 = vpop.f32.mrf.mxu0
        %379 = vmatprep.mubr.bf16.mxu0 0
        %380 = vmatmul.mubr.bf16.gmra.mxu0 %v287
        %v381 = vpop.f32.mrf.mxu0
        %v382 = vadd.f32 %v290, %v381
        %v383 = vpop.f32.mrf.mxu0
        %v384 = vpop.f32.mrf.mxu0
        %v385 = vadd.f32 %v290, %v384
        %v386 = vpop.f32.mrf.mxu0
        %387 = vmatprep.mubr.bf16.mxu0 0
        %388 = vmatmul.mubr.bf16.gmra.mxu0 %v288
        %v389 = vpop.f32.mrf.mxu0
        %v390 = vadd.f32 %v290, %v389
        %v391 = vpop.f32.mrf.mxu0
        %v392 = vpop.f32.mrf.mxu0
        %v393 = vadd.f32 %v290, %v392
        %v394 = vpop.f32.mrf.mxu0
        %395 = vmatprep.mubr.bf16.mxu0 0
        %396 = vmatmul.mubr.bf16.gmra.mxu0 %v289
        %v397 = vpop.f32.mrf.mxu0
        %v398 = vadd.f32 %v290, %v397
        %v399 = vpop.f32.mrf.mxu0
        %v400 = vpop.f32.mrf.mxu0
        %v401 = vadd.f32 %v290, %v400
        %v402 = vpop.f32.mrf.mxu0
        %403 = vdwg.mxu0
        %v404 = vld [vmem:[#allocation7] sm:$0xff]
        %v405 = vld [vmem:[#allocation7 + $0x10] sm:$0xff]
        %v406 = vld [vmem:[#allocation7 + $0x20] sm:$0xff]
        %v407 = vld [vmem:[#allocation7 + $0x30] sm:$0xff]
        %v408 = vld [vmem:[#allocation7 + $0x40] sm:$0xff]
        %v409 = vld [vmem:[#allocation7 + $0x50] sm:$0xff]
        %v410 = vld [vmem:[#allocation7 + $0x60] sm:$0xff]
        %v411 = vld [vmem:[#allocation7 + $0x70] sm:$0xff]
        %v412 = vld [vmem:[#allocation7 + $0x80] sm:$0xff]
        %v413 = vld [vmem:[#allocation7 + $0x90] sm:$0xff]
        %v414 = vld [vmem:[#allocation7 + $0xa0] sm:$0xff]
        %v415 = vld [vmem:[#allocation7 + $0xb0] sm:$0xff]
        %v416 = vld [vmem:[#allocation7 + $0xc0] sm:$0xff]
        %v417 = vld [vmem:[#allocation7 + $0xd0] sm:$0xff]
        %v418 = vld [vmem:[#allocation7 + $0xe0] sm:$0xff]
        %v419 = vld [vmem:[#allocation7 + $0xf0] sm:$0xff]
        %v420 = vpack.c.bf16 %v377, %v374
        %v421 = vpack.c.bf16 %v385, %v382
        %v422 = vpack.c.bf16 %v393, %v390
        %v423 = vpack.c.bf16 %v401, %v398
        %s424 = scalar_lea.vmem [#allocation8], 2
        %v425 = vld [vmem:[%s424] ss:$8 sm:$0x3]
        %v427 = vlaneseq
        %v428 = vshrl.u32 %v427, 7
        %v429 = vsub.s32 0, %v428
        %v430 = vrot.slane %v425, %v429
        %v431 = vlaneseq
        %v432 = vshrl.u32 %v431, 7
        %v433 = vsub.s32 1, %v432
        %v434 = vrot.slane %v425, %v433
        %v453 = vunpack.c.l.b16 %v404
        %v454 = vunpack.c.h.b16 %v404
        %v455 = vunpack.c.l.b16 %v405
        %v456 = vunpack.c.h.b16 %v405
        %v457 = vunpack.c.l.b16 %v406
        %v458 = vunpack.c.h.b16 %v406
        %v459 = vunpack.c.l.b16 %v407
        %v460 = vunpack.c.h.b16 %v407
        %v461 = vunpack.c.l.b16 %v408
        %v462 = vunpack.c.h.b16 %v408
        %v463 = vunpack.c.l.b16 %v409
        %v464 = vunpack.c.h.b16 %v409
        %v465 = vunpack.c.l.b16 %v410
        %v466 = vunpack.c.h.b16 %v410
        %v467 = vunpack.c.l.b16 %v411
        %v468 = vunpack.c.h.b16 %v411
        %v469 = vunpack.c.l.b16 %v412
        %v470 = vunpack.c.h.b16 %v412
        %v471 = vunpack.c.l.b16 %v413
        %v472 = vunpack.c.h.b16 %v413
        %v473 = vunpack.c.l.b16 %v414
        %v474 = vunpack.c.h.b16 %v414
        %v475 = vunpack.c.l.b16 %v415
        %v476 = vunpack.c.h.b16 %v415
        %v477 = vunpack.c.l.b16 %v416
        %v478 = vunpack.c.h.b16 %v416
        %v479 = vunpack.c.l.b16 %v417
        %v480 = vunpack.c.h.b16 %v417
        %v481 = vunpack.c.l.b16 %v418
        %v482 = vunpack.c.h.b16 %v418
        %v483 = vunpack.c.l.b16 %v419
        %v484 = vunpack.c.h.b16 %v419
        %v485 = vpack.c.b16 %v455, %v453
        %v486 = vpack.c.b16 %v456, %v454
        %v487 = vpack.c.b16 %v459, %v457
        %v488 = vpack.c.b16 %v460, %v458
        %v489 = vpack.c.b16 %v463, %v461
        %v490 = vpack.c.b16 %v464, %v462
        %v491 = vpack.c.b16 %v467, %v465
        %v492 = vpack.c.b16 %v468, %v466
        %v493 = vpack.c.b16 %v471, %v469
        %v494 = vpack.c.b16 %v472, %v470
        %v495 = vpack.c.b16 %v475, %v473
        %v496 = vpack.c.b16 %v476, %v474
        %v497 = vpack.c.b16 %v479, %v477
        %v498 = vpack.c.b16 %v480, %v478
        %v499 = vpack.c.b16 %v483, %v481
        %v500 = vpack.c.b16 %v484, %v482
        %517 = vmatprep.subr.bf16.mxu0 %v500
        %518 = vmatpush1.bf16.msra.mxu0 %v499
        %519 = vmatprep.subr.bf16.mxu0 %v498
        %520 = vmatpush1.bf16.msra.mxu0 %v497
        %521 = vmatprep.subr.bf16.mxu0 %v496
        %522 = vmatpush1.bf16.msra.mxu0 %v495
        %523 = vmatprep.subr.bf16.mxu0 %v494
        %524 = vmatpush1.bf16.msra.mxu0 %v493
        %525 = vmatprep.subr.bf16.mxu0 %v492
        %526 = vmatpush1.bf16.msra.mxu0 %v491
        %527 = vmatprep.subr.bf16.mxu0 %v490
        %528 = vmatpush1.bf16.msra.mxu0 %v489
        %529 = vmatprep.subr.bf16.mxu0 %v488
        %530 = vmatpush1.bf16.msra.mxu0 %v487
        %531 = vmatprep.subr.bf16.mxu0 %v486
        %532 = vmatpush1.bf16.msra.mxu0 %v485
        %533 = vmatprep.subr.bf16.mxu0 0
        %534 = vmatpush2.bf16.msra.mxu0 0
        %535 = vmatprep.subr.bf16.mxu0 0
        %536 = vmatpush2.bf16.msra.mxu0 0
        %537 = vmatprep.subr.bf16.mxu0 0
        %538 = vmatpush2.bf16.msra.mxu0 0
        %539 = vmatprep.subr.bf16.mxu0 0
        %540 = vmatpush2.bf16.msra.mxu0 0
        %541 = vmatprep.subr.bf16.mxu0 0
        %542 = vmatpush2.bf16.msra.mxu0 0
        %543 = vmatprep.subr.bf16.mxu0 0
        %544 = vmatpush2.bf16.msra.mxu0 0
        %545 = vmatprep.subr.bf16.mxu0 0
        %546 = vmatpush2.bf16.msra.mxu0 0
        %547 = vmatprep.subr.bf16.mxu0 0
        %548 = vmatpush2.bf16.msra.mxu0 0
        %549 = vmatprep.mubr.bf16.mxu0 0
        %550 = vmatmul.mubr.bf16.gmra.mxu0 %v420
        %v551 = vpop.f32.mrf.mxu0
        %v552 = vadd.f32 %v430, %v551
        %v553 = vpop.f32.mrf.mxu0
        %v554 = vadd.f32 %v434, %v553
        %v555 = vpop.f32.mrf.mxu0
        %v556 = vadd.f32 %v430, %v555
        %v557 = vpop.f32.mrf.mxu0
        %v558 = vadd.f32 %v434, %v557
        %559 = vmatprep.mubr.bf16.mxu0 0
        %560 = vmatmul.mubr.bf16.gmra.mxu0 %v421
        %v561 = vpop.f32.mrf.mxu0
        %v562 = vadd.f32 %v430, %v561
        %v563 = vpop.f32.mrf.mxu0
        %v564 = vadd.f32 %v434, %v563
        %v565 = vpop.f32.mrf.mxu0
        %v566 = vadd.f32 %v430, %v565
        %v567 = vpop.f32.mrf.mxu0
        %v568 = vadd.f32 %v434, %v567
        %569 = vmatprep.mubr.bf16.mxu0 0
        %570 = vmatmul.mubr.bf16.gmra.mxu0 %v422
        %v571 = vpop.f32.mrf.mxu0
        %v572 = vadd.f32 %v430, %v571
        %v573 = vpop.f32.mrf.mxu0
        %v574 = vadd.f32 %v434, %v573
        %v575 = vpop.f32.mrf.mxu0
        %v576 = vadd.f32 %v430, %v575
        %v577 = vpop.f32.mrf.mxu0
        %v578 = vadd.f32 %v434, %v577
        %579 = vmatprep.mubr.bf16.mxu0 0
        %580 = vmatmul.mubr.bf16.gmra.mxu0 %v423
        %v581 = vpop.f32.mrf.mxu0
        %v582 = vadd.f32 %v430, %v581
        %v583 = vpop.f32.mrf.mxu0
        %v584 = vadd.f32 %v434, %v583
        %v585 = vpop.f32.mrf.mxu0
        %v586 = vadd.f32 %v430, %v585
        %v587 = vpop.f32.mrf.mxu0
        %v588 = vadd.f32 %v434, %v587
        %589 = vdwg.mxu0
        %v590 = vld [vmem:[%s223 + $0x7] sm:$0x1]
        %v591 = vld [vmem:[%s223 + $0xf] sm:$0x1]
        %v592 = vld [vmem:[%s223 + $0x17] sm:$0x1]
        %v593 = vld [vmem:[%s223 + $0x1f] sm:$0x1]
        %v594 = vld [vmem:[%s223 + $0x27] sm:$0x1]
        %v595 = vld [vmem:[%s223 + $0x2f] sm:$0x1]
        %v596 = vld [vmem:[%s223 + $0x37] sm:$0x1]
        %v597 = vld [vmem:[%s223 + $0x3f] sm:$0x1]
        %v598 = vpack.c.bf16 %v590, %v590
        %v599 = vpack.c.bf16 %v591, %v591
        %v600 = vpack.c.bf16 %v592, %v592
        %v601 = vpack.c.bf16 %v593, %v593
        %v602 = vpack.c.bf16 %v594, %v594
        %v603 = vpack.c.bf16 %v595, %v595
        %v604 = vpack.c.bf16 %v596, %v596
        %v605 = vpack.c.bf16 %v597, %v597
        %v614 = vunpack.c.l.b16 %v598
        %v615 = vunpack.c.l.b16 %v599
        %v616 = vunpack.c.l.b16 %v600
        %v617 = vunpack.c.l.b16 %v601
        %v618 = vunpack.c.l.b16 %v602
        %v619 = vunpack.c.l.b16 %v603
        %v620 = vunpack.c.l.b16 %v604
        %v621 = vunpack.c.l.b16 %v605
        %v622 = vrot.slane %v615, 7
        %vm623 = vcmask 1041409
        %v624 = vsel %vm623, %v622, %v614
        %v625 = vrot.slane %v616, 6
        %vm626 = vcmask 1042434
        %v627 = vsel %vm626, %v625, %v624
        %v628 = vrot.slane %v617, 5
        %vm629 = vcmask 1043459
        %v630 = vsel %vm629, %v628, %v627
        %v631 = vrot.slane %v618, 4
        %vm632 = vcmask 1044484
        %v633 = vsel %vm632, %v631, %v630
        %v634 = vrot.slane %v619, 3
        %vm635 = vcmask 1045509
        %v636 = vsel %vm635, %v634, %v633
        %v637 = vrot.slane %v620, 2
        %vm638 = vcmask 1046534
        %v639 = vsel %vm638, %v637, %v636
        %v640 = vrot.slane %v621, 1
        %vm641 = vcmask 1047559
        %v642 = vsel %vm641, %v640, %v639
        %v643 = vpack.c.b16 %v642, %v642
        %645 = vmatprep.subr.bf16.mxu0 0
        %646 = vmatpush1.bf16.msra.mxu0 %v330
        %647 = vmatprep.subr.bf16.mxu0 0
        %648 = vmatpush1.bf16.msra.mxu0 %v329
        %649 = vmatprep.subr.bf16.mxu0 0
        %650 = vmatpush1.bf16.msra.mxu0 %v328
        %651 = vmatprep.subr.bf16.mxu0 0
        %652 = vmatpush1.bf16.msra.mxu0 %v327
        %653 = vmatprep.subr.bf16.mxu0 0
        %654 = vmatpush1.bf16.msra.mxu0 %v326
        %655 = vmatprep.subr.bf16.mxu0 0
        %656 = vmatpush1.bf16.msra.mxu0 %v325
        %657 = vmatprep.subr.bf16.mxu0 0
        %658 = vmatpush1.bf16.msra.mxu0 %v324
        %659 = vmatprep.subr.bf16.mxu0 0
        %660 = vmatpush1.bf16.msra.mxu0 %v323
        %661 = vmatprep.subr.bf16.mxu0 0
        %662 = vmatpush2.bf16.msra.mxu0 0
        %663 = vmatprep.subr.bf16.mxu0 0
        %664 = vmatpush2.bf16.msra.mxu0 0
        %665 = vmatprep.subr.bf16.mxu0 0
        %666 = vmatpush2.bf16.msra.mxu0 0
        %667 = vmatprep.subr.bf16.mxu0 0
        %668 = vmatpush2.bf16.msra.mxu0 0
        %669 = vmatprep.subr.bf16.mxu0 0
        %670 = vmatpush2.bf16.msra.mxu0 0
        %671 = vmatprep.subr.bf16.mxu0 0
        %672 = vmatpush2.bf16.msra.mxu0 0
        %673 = vmatprep.subr.bf16.mxu0 0
        %674 = vmatpush2.bf16.msra.mxu0 0
        %675 = vmatprep.subr.bf16.mxu0 0
        %676 = vmatpush2.bf16.msra.mxu0 0
        %677 = vmatprep.mubr.bf16.mxu0 0
        %678 = vmatmul.mubr.bf16.gmra.mxu0 %v643
        %v679 = vpop.f32.mrf.mxu0
        %v680 = vadd.f32 %v290, %v679
        %v681 = vpop.f32.mrf.mxu0
        %v682 = vpop.f32.mrf.mxu0
        %v683 = vpop.f32.mrf.mxu0
        %684 = vdwg.mxu0
        %v685 = vld [vmem:[#allocation5 + $0x40] sm:$0xf]
        %v686 = vld [vmem:[#allocation5 + $0x44] sm:$0xf]
        %v687 = vld [vmem:[#allocation5 + $0x48] sm:$0xf]
        %v688 = vld [vmem:[#allocation5 + $0x4c] sm:$0xf]
        %v689 = vld [vmem:[#allocation5 + $0x50] sm:$0xf]
        %v690 = vld [vmem:[#allocation5 + $0x54] sm:$0xf]
        %v691 = vld [vmem:[#allocation5 + $0x58] sm:$0xf]
        %v692 = vld [vmem:[#allocation5 + $0x5c] sm:$0xf]
        %v693 = vld [vmem:[#allocation5 + $0x60] sm:$0xf]
        %v694 = vld [vmem:[#allocation5 + $0x64] sm:$0xf]
        %v695 = vld [vmem:[#allocation5 + $0x68] sm:$0xf]
        %v696 = vld [vmem:[#allocation5 + $0x6c] sm:$0xf]
        %v697 = vld [vmem:[#allocation5 + $0x70] sm:$0xf]
        %v698 = vld [vmem:[#allocation5 + $0x74] sm:$0xf]
        %v699 = vld [vmem:[#allocation5 + $0x78] sm:$0xf]
        %v700 = vld [vmem:[#allocation5 + $0x7c] sm:$0xf]
        %v701 = vpack.c.bf16 %v680, %v680
        %v702 = vld [vmem:[#allocation8 + $0x1] ss:$0 sm:$0xff]
        %v719 = vunpack.c.l.b16 %v685
        %v720 = vunpack.c.l.b16 %v686
        %v721 = vunpack.c.l.b16 %v687
        %v722 = vunpack.c.l.b16 %v688
        %v723 = vunpack.c.l.b16 %v689
        %v724 = vunpack.c.l.b16 %v690
        %v725 = vunpack.c.l.b16 %v691
        %v726 = vunpack.c.l.b16 %v692
        %v727 = vunpack.c.l.b16 %v693
        %v728 = vunpack.c.l.b16 %v694
        %v729 = vunpack.c.l.b16 %v695
        %v730 = vunpack.c.l.b16 %v696
        %v731 = vunpack.c.l.b16 %v697
        %v732 = vunpack.c.l.b16 %v698
        %v733 = vunpack.c.l.b16 %v699
        %v734 = vunpack.c.l.b16 %v700
        %v735 = vpack.c.b16 %v720, %v719
        %v736 = vpack.c.b16 %v722, %v721
        %v737 = vpack.c.b16 %v724, %v723
        %v738 = vpack.c.b16 %v726, %v725
        %v739 = vpack.c.b16 %v728, %v727
        %v740 = vpack.c.b16 %v730, %v729
        %v741 = vpack.c.b16 %v732, %v731
        %v742 = vpack.c.b16 %v734, %v733
        %751 = vmatprep.subr.bf16.mxu0 0
        %752 = vmatpush1.bf16.msra.mxu0 %v742
        %753 = vmatprep.subr.bf16.mxu0 0
        %754 = vmatpush1.bf16.msra.mxu0 %v741
        %755 = vmatprep.subr.bf16.mxu0 0
        %756 = vmatpush1.bf16.msra.mxu0 %v740
        %757 = vmatprep.subr.bf16.mxu0 0
        %758 = vmatpush1.bf16.msra.mxu0 %v739
        %759 = vmatprep.subr.bf16.mxu0 0
        %760 = vmatpush1.bf16.msra.mxu0 %v738
        %761 = vmatprep.subr.bf16.mxu0 0
        %762 = vmatpush1.bf16.msra.mxu0 %v737
        %763 = vmatprep.subr.bf16.mxu0 0
        %764 = vmatpush1.bf16.msra.mxu0 %v736
        %765 = vmatprep.subr.bf16.mxu0 0
        %766 = vmatpush1.bf16.msra.mxu0 %v735
        %767 = vmatprep.subr.bf16.mxu0 0
        %768 = vmatpush2.bf16.msra.mxu0 0
        %769 = vmatprep.subr.bf16.mxu0 0
        %770 = vmatpush2.bf16.msra.mxu0 0
        %771 = vmatprep.subr.bf16.mxu0 0
        %772 = vmatpush2.bf16.msra.mxu0 0
        %773 = vmatprep.subr.bf16.mxu0 0
        %774 = vmatpush2.bf16.msra.mxu0 0
        %775 = vmatprep.subr.bf16.mxu0 0
        %776 = vmatpush2.bf16.msra.mxu0 0
        %777 = vmatprep.subr.bf16.mxu0 0
        %778 = vmatpush2.bf16.msra.mxu0 0
        %779 = vmatprep.subr.bf16.mxu0 0
        %780 = vmatpush2.bf16.msra.mxu0 0
        %781 = vmatprep.subr.bf16.mxu0 0
        %782 = vmatpush2.bf16.msra.mxu0 0
        %783 = vmatprep.mubr.bf16.mxu0 0
        %784 = vmatmul.mubr.bf16.gmra.mxu0 %v701
        %v785 = vpop.f32.mrf.mxu0
        %v786 = vadd.f32 %v702, %v785
        %v787 = vpop.f32.mrf.mxu0
        %v788 = vpop.f32.mrf.mxu0
        %v789 = vpop.f32.mrf.mxu0
        %790 = vdwg.mxu0
        %v792 = vcombine.high %v786, %v786
        %v794 = vunpack.c.l.s4 1966171168
        %v795 = vunpack.c.0.s8 %v794
        %v796 = vlaneseq
        %v797 = vshrl.u32 %v796, 7
        %v798 = vsub.s32 %v795, %v797
        %v799 = vrot.slane %v786, %v798
        %v801 = vunpack.c.l.s4 1966171168
        %v802 = vunpack.c.0.s8 %v801
        %v803 = vlaneseq
        %v804 = vshrl.u32 %v803, 7
        %v805 = vsub.s32 %v802, %v804
        %v806 = vrot.slane %v792, %v805
        %v807 = vcombine.high %v799, %v799
        %v808 = vcombine.high %v806, %v806
        %v810 = vunpack.c.l.s4 1966171168
        %v811 = vunpack.c.0.s8 %v810
        %v812 = vlaneseq
        %v813 = vshrl.u32 %v812, 7
        %v814 = vsub.s32 %v811, %v813
        %v815 = vrot.slane %v799, %v814
        %v817 = vunpack.c.l.s4 1966171168
        %v818 = vunpack.c.0.s8 %v817
        %v819 = vlaneseq
        %v820 = vshrl.u32 %v819, 7
        %v821 = vsub.s32 %v818, %v820
        %v822 = vrot.slane %v806, %v821
        %v824 = vunpack.c.l.s4 1966171168
        %v825 = vunpack.c.0.s8 %v824
        %v826 = vlaneseq
        %v827 = vshrl.u32 %v826, 7
        %v828 = vsub.s32 %v825, %v827
        %v829 = vrot.slane %v807, %v828
        %v831 = vunpack.c.l.s4 1966171168
        %v832 = vunpack.c.0.s8 %v831
        %v833 = vlaneseq
        %v834 = vshrl.u32 %v833, 7
        %v835 = vsub.s32 %v832, %v834
        %v836 = vrot.slane %v808, %v835
        %v837 = vcombine.high %v815, %v815
        %v838 = vcombine.high %v822, %v822
        %v839 = vcombine.high %v829, %v829
        %v840 = vcombine.high %v836, %v836
        %v841 = vlaneseq
        %v842 = vshrl.u32 %v841, 7
        %v843 = vsub.s32 0, %v842
        %v844 = vrot.slane %v815, %v843
        %v845 = vlaneseq
        %v846 = vshrl.u32 %v845, 7
        %v847 = vsub.s32 0, %v846
        %v848 = vrot.slane %v829, %v847
        %v849 = vlaneseq
        %v850 = vshrl.u32 %v849, 7
        %v851 = vsub.s32 0, %v850
        %v852 = vrot.slane %v837, %v851
        %v853 = vlaneseq
        %v854 = vshrl.u32 %v853, 7
        %v855 = vsub.s32 0, %v854
        %v856 = vrot.slane %v839, %v855
        %v857 = vlaneseq
        %v858 = vshrl.u32 %v857, 7
        %v859 = vsub.s32 0, %v858
        %v860 = vrot.slane %v822, %v859
        %v861 = vlaneseq
        %v862 = vshrl.u32 %v861, 7
        %v863 = vsub.s32 0, %v862
        %v864 = vrot.slane %v836, %v863
        %v865 = vlaneseq
        %v866 = vshrl.u32 %v865, 7
        %v867 = vsub.s32 0, %v866
        %v868 = vrot.slane %v838, %v867
        %v869 = vlaneseq
        %v870 = vshrl.u32 %v869, 7
        %v871 = vsub.s32 0, %v870
        %v872 = vrot.slane %v840, %v871
        %v881 = vmul.f32 %v844, %v552
        %v882 = vmul.f32 %v848, %v556
        %v883 = vmul.f32 %v852, %v562
        %v884 = vmul.f32 %v856, %v566
        %v885 = vmul.f32 %v860, %v572
        %v886 = vmul.f32 %v864, %v576
        %v887 = vmul.f32 %v868, %v582
        %v888 = vmul.f32 %v872, %v586
        %v889 = vld [vmem:[#allocation5 + $0x80] sm:$0xf]
        %v890 = vld [vmem:[#allocation5 + $0x84] sm:$0xf]
        %v891 = vld [vmem:[#allocation5 + $0x88] sm:$0xf]
        %v892 = vld [vmem:[#allocation5 + $0x8c] sm:$0xf]
        %v893 = vld [vmem:[#allocation5 + $0x90] sm:$0xf]
        %v894 = vld [vmem:[#allocation5 + $0x94] sm:$0xf]
        %v895 = vld [vmem:[#allocation5 + $0x98] sm:$0xf]
        %v896 = vld [vmem:[#allocation5 + $0x9c] sm:$0xf]
        %v897 = vld [vmem:[#allocation5 + $0xa0] sm:$0xf]
        %v898 = vld [vmem:[#allocation5 + $0xa4] sm:$0xf]
        %v899 = vld [vmem:[#allocation5 + $0xa8] sm:$0xf]
        %v900 = vld [vmem:[#allocation5 + $0xac] sm:$0xf]
        %v901 = vld [vmem:[#allocation5 + $0xb0] sm:$0xf]
        %v902 = vld [vmem:[#allocation5 + $0xb4] sm:$0xf]
        %v903 = vld [vmem:[#allocation5 + $0xb8] sm:$0xf]
        %v904 = vld [vmem:[#allocation5 + $0xbc] sm:$0xf]
        %v905 = vpack.c.bf16 %v882, %v881
        %v906 = vpack.c.bf16 %v884, %v883
        %v907 = vpack.c.bf16 %v886, %v885
        %v908 = vpack.c.bf16 %v888, %v887
        %v925 = vunpack.c.l.b16 %v889
        %v926 = vunpack.c.l.b16 %v890
        %v927 = vunpack.c.l.b16 %v891
        %v928 = vunpack.c.l.b16 %v892
        %v929 = vunpack.c.l.b16 %v893
        %v930 = vunpack.c.l.b16 %v894
        %v931 = vunpack.c.l.b16 %v895
        %v932 = vunpack.c.l.b16 %v896
        %v933 = vunpack.c.l.b16 %v897
        %v934 = vunpack.c.l.b16 %v898
        %v935 = vunpack.c.l.b16 %v899
        %v936 = vunpack.c.l.b16 %v900
        %v937 = vunpack.c.l.b16 %v901
        %v938 = vunpack.c.l.b16 %v902
        %v939 = vunpack.c.l.b16 %v903
        %v940 = vunpack.c.l.b16 %v904
        %v941 = vpack.c.b16 %v926, %v925
        %v942 = vpack.c.b16 %v928, %v927
        %v943 = vpack.c.b16 %v930, %v929
        %v944 = vpack.c.b16 %v932, %v931
        %v945 = vpack.c.b16 %v934, %v933
        %v946 = vpack.c.b16 %v936, %v935
        %v947 = vpack.c.b16 %v938, %v937
        %v948 = vpack.c.b16 %v940, %v939
        %957 = vmatprep.subr.bf16.mxu0 0
        %958 = vmatpush1.bf16.msra.mxu0 %v948
        %959 = vmatprep.subr.bf16.mxu0 0
        %960 = vmatpush1.bf16.msra.mxu0 %v947
        %961 = vmatprep.subr.bf16.mxu0 0
        %962 = vmatpush1.bf16.msra.mxu0 %v946
        %963 = vmatprep.subr.bf16.mxu0 0
        %964 = vmatpush1.bf16.msra.mxu0 %v945
        %965 = vmatprep.subr.bf16.mxu0 0
        %966 = vmatpush1.bf16.msra.mxu0 %v944
        %967 = vmatprep.subr.bf16.mxu0 0
        %968 = vmatpush1.bf16.msra.mxu0 %v943
        %969 = vmatprep.subr.bf16.mxu0 0
        %970 = vmatpush1.bf16.msra.mxu0 %v942
        %971 = vmatprep.subr.bf16.mxu0 0
        %972 = vmatpush1.bf16.msra.mxu0 %v941
        %973 = vmatprep.subr.bf16.mxu0 0
        %974 = vmatpush2.bf16.msra.mxu0 0
        %975 = vmatprep.subr.bf16.mxu0 0
        %976 = vmatpush2.bf16.msra.mxu0 0
        %977 = vmatprep.subr.bf16.mxu0 0
        %978 = vmatpush2.bf16.msra.mxu0 0
        %979 = vmatprep.subr.bf16.mxu0 0
        %980 = vmatpush2.bf16.msra.mxu0 0
        %981 = vmatprep.subr.bf16.mxu0 0
        %982 = vmatpush2.bf16.msra.mxu0 0
        %983 = vmatprep.subr.bf16.mxu0 0
        %984 = vmatpush2.bf16.msra.mxu0 0
        %985 = vmatprep.subr.bf16.mxu0 0
        %986 = vmatpush2.bf16.msra.mxu0 0
        %987 = vmatprep.subr.bf16.mxu0 0
        %988 = vmatpush2.bf16.msra.mxu0 0
        %989 = vmatprep.mubr.bf16.mxu0 0
        %990 = vmatmul.mubr.bf16.gmra.mxu0 %v905
        %v991 = vpop.f32.mrf.mxu0
        %v992 = vadd.f32 0.0, %v991
        %v993 = vpop.f32.mrf.mxu0
        %v994 = vpop.f32.mrf.mxu0
        %v995 = vadd.f32 0.0, %v994
        %v996 = vpop.f32.mrf.mxu0
        %997 = vmatprep.mubr.bf16.mxu0 0
        %998 = vmatmul.mubr.bf16.gmra.mxu0 %v906
        %v999 = vpop.f32.mrf.mxu0
        %v1000 = vadd.f32 0.0, %v999
        %v1001 = vpop.f32.mrf.mxu0
        %v1002 = vpop.f32.mrf.mxu0
        %v1003 = vadd.f32 0.0, %v1002
        %v1004 = vpop.f32.mrf.mxu0
        %1005 = vmatprep.mubr.bf16.mxu0 0
        %1006 = vmatmul.mubr.bf16.gmra.mxu0 %v907
        %v1007 = vpop.f32.mrf.mxu0
        %v1008 = vadd.f32 0.0, %v1007
        %v1009 = vpop.f32.mrf.mxu0
        %v1010 = vpop.f32.mrf.mxu0
        %v1011 = vadd.f32 0.0, %v1010
        %v1012 = vpop.f32.mrf.mxu0
        %1013 = vmatprep.mubr.bf16.mxu0 0
        %1014 = vmatmul.mubr.bf16.gmra.mxu0 %v908
        %v1015 = vpop.f32.mrf.mxu0
        %v1016 = vadd.f32 0.0, %v1015
        %v1017 = vpop.f32.mrf.mxu0
        %v1018 = vpop.f32.mrf.mxu0
        %v1019 = vadd.f32 0.0, %v1018
        %v1020 = vpop.f32.mrf.mxu0
        %1021 = vdwg.mxu0
        %v1022 = vrot.slane %v992, 4
        %v1023 = vmax.f32 %v992, %v1022
        %v1024 = vrot.slane %v1023, 2
        %v1025 = vmax.f32 %v1023, %v1024
        %v1026 = vrot.slane %v1025, 1
        %v1027 = vmax.f32 %v1025, %v1026
        %v1028 = vrot.slane %v995, 4
        %v1029 = vmax.f32 %v995, %v1028
        %v1030 = vrot.slane %v1029, 2
        %v1031 = vmax.f32 %v1029, %v1030
        %v1032 = vrot.slane %v1031, 1
        %v1033 = vmax.f32 %v1031, %v1032
        %v1034 = vrot.slane %v1000, 4
        %v1035 = vmax.f32 %v1000, %v1034
        %v1036 = vrot.slane %v1035, 2
        %v1037 = vmax.f32 %v1035, %v1036
        %v1038 = vrot.slane %v1037, 1
        %v1039 = vmax.f32 %v1037, %v1038
        %v1040 = vrot.slane %v1003, 4
        %v1041 = vmax.f32 %v1003, %v1040
        %v1042 = vrot.slane %v1041, 2
        %v1043 = vmax.f32 %v1041, %v1042
        %v1044 = vrot.slane %v1043, 1
        %v1045 = vmax.f32 %v1043, %v1044
        %v1046 = vrot.slane %v1008, 4
        %v1047 = vmax.f32 %v1008, %v1046
        %v1048 = vrot.slane %v1047, 2
        %v1049 = vmax.f32 %v1047, %v1048
        %v1050 = vrot.slane %v1049, 1
        %v1051 = vmax.f32 %v1049, %v1050
        %v1052 = vrot.slane %v1011, 4
        %v1053 = vmax.f32 %v1011, %v1052
        %v1054 = vrot.slane %v1053, 2
        %v1055 = vmax.f32 %v1053, %v1054
        %v1056 = vrot.slane %v1055, 1
        %v1057 = vmax.f32 %v1055, %v1056
        %v1058 = vrot.slane %v1016, 4
        %v1059 = vmax.f32 %v1016, %v1058
        %v1060 = vrot.slane %v1059, 2
        %v1061 = vmax.f32 %v1059, %v1060
        %v1062 = vrot.slane %v1061, 1
        %v1063 = vmax.f32 %v1061, %v1062
        %v1064 = vrot.slane %v1019, 4
        %v1065 = vmax.f32 %v1019, %v1064
        %v1066 = vrot.slane %v1065, 2
        %v1067 = vmax.f32 %v1065, %v1066
        %v1068 = vrot.slane %v1067, 1
        %v1069 = vmax.f32 %v1067, %v1068
        %v1070 = vsub.f32 %v992, %v1027
        %v1071 = vsub.f32 %v995, %v1033
        %v1072 = vsub.f32 %v1000, %v1039
        %v1073 = vsub.f32 %v1003, %v1045
        %v1074 = vsub.f32 %v1008, %v1051
        %v1075 = vsub.f32 %v1011, %v1057
        %v1076 = vsub.f32 %v1016, %v1063
        %v1077 = vsub.f32 %v1019, %v1069
        %v1078 = vmul.f32 %v1070, 1.442695
        %v1079 = vpow.pop %v1078
        %v1080 = vmul.f32 %v1071, 1.442695
        %v1081 = vpow.pop %v1080
        %v1082 = vmul.f32 %v1072, 1.442695
        %v1083 = vpow.pop %v1082
        %v1084 = vmul.f32 %v1073, 1.442695
        %v1085 = vpow.pop %v1084
        %v1086 = vmul.f32 %v1074, 1.442695
        %v1087 = vpow.pop %v1086
        %v1088 = vmul.f32 %v1075, 1.442695
        %v1089 = vpow.pop %v1088
        %v1090 = vmul.f32 %v1076, 1.442695
        %v1091 = vpow.pop %v1090
        %v1092 = vmul.f32 %v1077, 1.442695
        %v1093 = vpow.pop %v1092
        %v1094 = vrot.slane %v1079, 4
        %v1095 = vadd.f32 %v1079, %v1094
        %v1096 = vrot.slane %v1095, 2
        %v1097 = vadd.f32 %v1095, %v1096
        %v1098 = vrot.slane %v1097, 1
        %v1099 = vadd.f32 %v1097, %v1098
        %v1100 = vrot.slane %v1081, 4
        %v1101 = vadd.f32 %v1081, %v1100
        %v1102 = vrot.slane %v1101, 2
        %v1103 = vadd.f32 %v1101, %v1102
        %v1104 = vrot.slane %v1103, 1
        %v1105 = vadd.f32 %v1103, %v1104
        %v1106 = vrot.slane %v1083, 4
        %v1107 = vadd.f32 %v1083, %v1106
        %v1108 = vrot.slane %v1107, 2
        %v1109 = vadd.f32 %v1107, %v1108
        %v1110 = vrot.slane %v1109, 1
        %v1111 = vadd.f32 %v1109, %v1110
        %v1112 = vrot.slane %v1085, 4
        %v1113 = vadd.f32 %v1085, %v1112
        %v1114 = vrot.slane %v1113, 2
        %v1115 = vadd.f32 %v1113, %v1114
        %v1116 = vrot.slane %v1115, 1
        %v1117 = vadd.f32 %v1115, %v1116
        %v1118 = vrot.slane %v1087, 4
        %v1119 = vadd.f32 %v1087, %v1118
        %v1120 = vrot.slane %v1119, 2
        %v1121 = vadd.f32 %v1119, %v1120
        %v1122 = vrot.slane %v1121, 1
        %v1123 = vadd.f32 %v1121, %v1122
        %v1124 = vrot.slane %v1089, 4
        %v1125 = vadd.f32 %v1089, %v1124
        %v1126 = vrot.slane %v1125, 2
        %v1127 = vadd.f32 %v1125, %v1126
        %v1128 = vrot.slane %v1127, 1
        %v1129 = vadd.f32 %v1127, %v1128
        %v1130 = vrot.slane %v1091, 4
        %v1131 = vadd.f32 %v1091, %v1130
        %v1132 = vrot.slane %v1131, 2
        %v1133 = vadd.f32 %v1131, %v1132
        %v1134 = vrot.slane %v1133, 1
        %v1135 = vadd.f32 %v1133, %v1134
        %v1136 = vrot.slane %v1093, 4
        %v1137 = vadd.f32 %v1093, %v1136
        %v1138 = vrot.slane %v1137, 2
        %v1139 = vadd.f32 %v1137, %v1138
        %v1140 = vrot.slane %v1139, 1
        %v1141 = vadd.f32 %v1139, %v1140
        %v1142 = vrcp.pop %v1099
        %v1143 = vmul.f32 %v1079, %v1142
        %v1144 = vrcp.pop %v1105
        %v1145 = vmul.f32 %v1081, %v1144
        %v1146 = vrcp.pop %v1111
        %v1147 = vmul.f32 %v1083, %v1146
        %v1148 = vrcp.pop %v1117
        %v1149 = vmul.f32 %v1085, %v1148
        %v1150 = vrcp.pop %v1123
        %v1151 = vmul.f32 %v1087, %v1150
        %v1152 = vrcp.pop %v1129
        %v1153 = vmul.f32 %v1089, %v1152
        %v1154 = vrcp.pop %v1135
        %v1155 = vmul.f32 %v1091, %v1154
        %v1156 = vrcp.pop %v1141
        %v1157 = vmul.f32 %v1093, %v1156
        %v1158 = vmul.f32 %v1143, %v554
        %v1159 = vmul.f32 %v1145, %v558
        %v1160 = vmul.f32 %v1147, %v564
        %v1161 = vmul.f32 %v1149, %v568
        %v1162 = vmul.f32 %v1151, %v574
        %v1163 = vmul.f32 %v1153, %v578
        %v1164 = vmul.f32 %v1155, %v584
        %v1165 = vmul.f32 %v1157, %v588
        %v1166 = vrot.slane %v1158, 4
        %v1167 = vadd.f32 %v1158, %v1166
        %v1168 = vrot.slane %v1167, 2
        %v1169 = vadd.f32 %v1167, %v1168
        %v1170 = vrot.slane %v1169, 1
        %v1171 = vadd.f32 %v1169, %v1170
        %v1172 = vrot.slane %v1159, 4
        %v1173 = vadd.f32 %v1159, %v1172
        %v1174 = vrot.slane %v1173, 2
        %v1175 = vadd.f32 %v1173, %v1174
        %v1176 = vrot.slane %v1175, 1
        %v1177 = vadd.f32 %v1175, %v1176
        %v1178 = vrot.slane %v1160, 4
        %v1179 = vadd.f32 %v1160, %v1178
        %v1180 = vrot.slane %v1179, 2
        %v1181 = vadd.f32 %v1179, %v1180
        %v1182 = vrot.slane %v1181, 1
        %v1183 = vadd.f32 %v1181, %v1182
        %v1184 = vrot.slane %v1161, 4
        %v1185 = vadd.f32 %v1161, %v1184
        %v1186 = vrot.slane %v1185, 2
        %v1187 = vadd.f32 %v1185, %v1186
        %v1188 = vrot.slane %v1187, 1
        %v1189 = vadd.f32 %v1187, %v1188
        %v1190 = vrot.slane %v1162, 4
        %v1191 = vadd.f32 %v1162, %v1190
        %v1192 = vrot.slane %v1191, 2
        %v1193 = vadd.f32 %v1191, %v1192
        %v1194 = vrot.slane %v1193, 1
        %v1195 = vadd.f32 %v1193, %v1194
        %v1196 = vrot.slane %v1163, 4
        %v1197 = vadd.f32 %v1163, %v1196
        %v1198 = vrot.slane %v1197, 2
        %v1199 = vadd.f32 %v1197, %v1198
        %v1200 = vrot.slane %v1199, 1
        %v1201 = vadd.f32 %v1199, %v1200
        %v1202 = vrot.slane %v1164, 4
        %v1203 = vadd.f32 %v1164, %v1202
        %v1204 = vrot.slane %v1203, 2
        %v1205 = vadd.f32 %v1203, %v1204
        %v1206 = vrot.slane %v1205, 1
        %v1207 = vadd.f32 %v1205, %v1206
        %v1208 = vrot.slane %v1165, 4
        %v1209 = vadd.f32 %v1165, %v1208
        %v1210 = vrot.slane %v1209, 2
        %v1211 = vadd.f32 %v1209, %v1210
        %v1212 = vrot.slane %v1211, 1
        %v1213 = vadd.f32 %v1211, %v1212
        %v1214 = vld [vmem:[#allocation5 + $0xc0] sm:$0xf]
        %v1215 = vld [vmem:[#allocation5 + $0xc4] sm:$0xf]
        %v1216 = vld [vmem:[#allocation5 + $0xc8] sm:$0xf]
        %v1217 = vld [vmem:[#allocation5 + $0xcc] sm:$0xf]
        %v1218 = vld [vmem:[#allocation5 + $0xd0] sm:$0xf]
        %v1219 = vld [vmem:[#allocation5 + $0xd4] sm:$0xf]
        %v1220 = vld [vmem:[#allocation5 + $0xd8] sm:$0xf]
        %v1221 = vld [vmem:[#allocation5 + $0xdc] sm:$0xf]
        %v1222 = vld [vmem:[#allocation5 + $0xe0] sm:$0xf]
        %v1223 = vld [vmem:[#allocation5 + $0xe4] sm:$0xf]
        %v1224 = vld [vmem:[#allocation5 + $0xe8] sm:$0xf]
        %v1225 = vld [vmem:[#allocation5 + $0xec] sm:$0xf]
        %v1226 = vld [vmem:[#allocation5 + $0xf0] sm:$0xf]
        %v1227 = vld [vmem:[#allocation5 + $0xf4] sm:$0xf]
        %v1228 = vld [vmem:[#allocation5 + $0xf8] sm:$0xf]
        %v1229 = vld [vmem:[#allocation5 + $0xfc] sm:$0xf]
        %v1230 = vpack.c.bf16 %v1171, %v1171
        %v1231 = vpack.c.bf16 %v1177, %v1177
        %v1232 = vpack.c.bf16 %v1183, %v1183
        %v1233 = vpack.c.bf16 %v1189, %v1189
        %v1234 = vpack.c.bf16 %v1195, %v1195
        %v1235 = vpack.c.bf16 %v1201, %v1201
        %v1236 = vpack.c.bf16 %v1207, %v1207
        %v1237 = vpack.c.bf16 %v1213, %v1213
        %v1238 = vld [vmem:[#allocation8 + $0x3] ss:$0 sm:$0xff]
        %v1247 = vunpack.c.l.b16 %v1230
        %v1248 = vunpack.c.l.b16 %v1231
        %v1249 = vunpack.c.l.b16 %v1232
        %v1250 = vunpack.c.l.b16 %v1233
        %v1251 = vunpack.c.l.b16 %v1234
        %v1252 = vunpack.c.l.b16 %v1235
        %v1253 = vunpack.c.l.b16 %v1236
        %v1254 = vunpack.c.l.b16 %v1237
        %v1255 = vsel %vm623, %v1248, %v1247
        %v1256 = vsel %vm626, %v1249, %v1255
        %v1257 = vsel %vm629, %v1250, %v1256
        %v1258 = vsel %vm632, %v1251, %v1257
        %v1259 = vsel %vm635, %v1252, %v1258
        %v1260 = vsel %vm638, %v1253, %v1259
        %v1261 = vsel %vm641, %v1254, %v1260
        %v1262 = vpack.c.b16 %v1261, %v1261
        %v1280 = vunpack.c.l.b16 %v1214
        %v1281 = vunpack.c.l.b16 %v1215
        %v1282 = vunpack.c.l.b16 %v1216
        %v1283 = vunpack.c.l.b16 %v1217
        %v1284 = vunpack.c.l.b16 %v1218
        %v1285 = vunpack.c.l.b16 %v1219
        %v1286 = vunpack.c.l.b16 %v1220
        %v1287 = vunpack.c.l.b16 %v1221
        %v1288 = vunpack.c.l.b16 %v1222
        %v1289 = vunpack.c.l.b16 %v1223
        %v1290 = vunpack.c.l.b16 %v1224
        %v1291 = vunpack.c.l.b16 %v1225
        %v1292 = vunpack.c.l.b16 %v1226
        %v1293 = vunpack.c.l.b16 %v1227
        %v1294 = vunpack.c.l.b16 %v1228
        %v1295 = vunpack.c.l.b16 %v1229
        %v1296 = vpack.c.b16 %v1281, %v1280
        %v1297 = vpack.c.b16 %v1283, %v1282
        %v1298 = vpack.c.b16 %v1285, %v1284
        %v1299 = vpack.c.b16 %v1287, %v1286
        %v1300 = vpack.c.b16 %v1289, %v1288
        %v1301 = vpack.c.b16 %v1291, %v1290
        %v1302 = vpack.c.b16 %v1293, %v1292
        %v1303 = vpack.c.b16 %v1295, %v1294
        %1312 = vmatprep.subr.bf16.mxu0 0
        %1313 = vmatpush1.bf16.msra.mxu0 %v1303
        %1314 = vmatprep.subr.bf16.mxu0 0
        %1315 = vmatpush1.bf16.msra.mxu0 %v1302
        %1316 = vmatprep.subr.bf16.mxu0 0
        %1317 = vmatpush1.bf16.msra.mxu0 %v1301
        %1318 = vmatprep.subr.bf16.mxu0 0
        %1319 = vmatpush1.bf16.msra.mxu0 %v1300
        %1320 = vmatprep.subr.bf16.mxu0 0
        %1321 = vmatpush1.bf16.msra.mxu0 %v1299
        %1322 = vmatprep.subr.bf16.mxu0 0
        %1323 = vmatpush1.bf16.msra.mxu0 %v1298
        %1324 = vmatprep.subr.bf16.mxu0 0
        %1325 = vmatpush1.bf16.msra.mxu0 %v1297
        %1326 = vmatprep.subr.bf16.mxu0 0
        %1327 = vmatpush1.bf16.msra.mxu0 %v1296
        %1328 = vmatprep.subr.bf16.mxu0 0
        %1329 = vmatpush2.bf16.msra.mxu0 0
        %1330 = vmatprep.subr.bf16.mxu0 0
        %1331 = vmatpush2.bf16.msra.mxu0 0
        %1332 = vmatprep.subr.bf16.mxu0 0
        %1333 = vmatpush2.bf16.msra.mxu0 0
        %1334 = vmatprep.subr.bf16.mxu0 0
        %1335 = vmatpush2.bf16.msra.mxu0 0
        %1336 = vmatprep.subr.bf16.mxu0 0
        %1337 = vmatpush2.bf16.msra.mxu0 0
        %1338 = vmatprep.subr.bf16.mxu0 0
        %1339 = vmatpush2.bf16.msra.mxu0 0
        %1340 = vmatprep.subr.bf16.mxu0 0
        %1341 = vmatpush2.bf16.msra.mxu0 0
        %1342 = vmatprep.subr.bf16.mxu0 0
        %1343 = vmatpush2.bf16.msra.mxu0 0
        %1344 = vmatprep.mubr.bf16.mxu0 0
        %1345 = vmatmul.mubr.bf16.gmra.mxu0 %v1262
        %v1346 = vpop.f32.mrf.mxu0
        %v1347 = vadd.f32 %v1238, %v1346
        %v1348 = vpop.f32.mrf.mxu0
        %v1349 = vpop.f32.mrf.mxu0
        %v1350 = vpop.f32.mrf.mxu0
        %1351 = vdwg.mxu0
        %v1352 = vadd.f32 %v680, %v1347
        %v1353 = vld [vmem:[#allocation8 + $0x4] ss:$0 sm:$0xff]
        %v1354 = vld [vmem:[#allocation8 + $0x5] ss:$0 sm:$0xff]
        %1355 = vadd.xlane.f32.xlu0 %v1352
        %v1356 = vpop.xlane.xlu0 %1355
        %v1357 = vrcp.pop 128.0
        %v1358 = vmul.f32 %v1356, %v1357
        %v1359 = vsub.f32 %v1352, %v1358
        %v1360 = vmul.f32 %v1359, %v1359
        %1361 = vadd.xlane.f32.xlu0 %v1360
        %v1362 = vpop.xlane.xlu0 %1361
        %v1363 = vmul.f32 %v1362, %v1357
        %v1364 = vadd.f32 %v1363, 1e-05
        %v1365 = vrsqrt.pop %v1364
        %v1366 = vmul.f32 %v1359, %v1365
        %v1367 = vmul.f32 %v1366, %v1353
        %v1368 = vadd.f32 %v1367, %v1354
        %v1369 = vld [vmem:[#allocation7 + $0x8] sm:$0xff]
        %v1370 = vld [vmem:[#allocation7 + $0x18] sm:$0xff]
        %v1371 = vld [vmem:[#allocation7 + $0x28] sm:$0xff]
        %v1372 = vld [vmem:[#allocation7 + $0x38] sm:$0xff]
        %v1373 = vld [vmem:[#allocation7 + $0x48] sm:$0xff]
        %v1374 = vld [vmem:[#allocation7 + $0x58] sm:$0xff]
        %v1375 = vld [vmem:[#allocation7 + $0x68] sm:$0xff]
        %v1376 = vld [vmem:[#allocation7 + $0x78] sm:$0xff]
        %v1377 = vld [vmem:[#allocation7 + $0x88] sm:$0xff]
        %v1378 = vld [vmem:[#allocation7 + $0x98] sm:$0xff]
        %v1379 = vld [vmem:[#allocation7 + $0xa8] sm:$0xff]
        %v1380 = vld [vmem:[#allocation7 + $0xb8] sm:$0xff]
        %v1381 = vld [vmem:[#allocation7 + $0xc8] sm:$0xff]
        %v1382 = vld [vmem:[#allocation7 + $0xd8] sm:$0xff]
        %v1383 = vld [vmem:[#allocation7 + $0xe8] sm:$0xff]
        %v1384 = vld [vmem:[#allocation7 + $0xf8] sm:$0xff]
        %v1385 = vpack.c.bf16 %v1368, %v1368
        %s1386 = scalar_lea.vmem [#allocation8], 6
        %v1387 = vld [vmem:[%s1386] ss:$8 sm:$0x3]
        %v1389 = vlaneseq
        %v1390 = vshrl.u32 %v1389, 7
        %v1391 = vsub.s32 0, %v1390
        %v1392 = vrot.slane %v1387, %v1391
        %v1393 = vlaneseq
        %v1394 = vshrl.u32 %v1393, 7
        %v1395 = vsub.s32 1, %v1394
        %v1396 = vrot.slane %v1387, %v1395
        %v1415 = vunpack.c.l.b16 %v1369
        %v1416 = vunpack.c.h.b16 %v1369
        %v1417 = vunpack.c.l.b16 %v1370
        %v1418 = vunpack.c.h.b16 %v1370
        %v1419 = vunpack.c.l.b16 %v1371
        %v1420 = vunpack.c.h.b16 %v1371
        %v1421 = vunpack.c.l.b16 %v1372
        %v1422 = vunpack.c.h.b16 %v1372
        %v1423 = vunpack.c.l.b16 %v1373
        %v1424 = vunpack.c.h.b16 %v1373
        %v1425 = vunpack.c.l.b16 %v1374
        %v1426 = vunpack.c.h.b16 %v1374
        %v1427 = vunpack.c.l.b16 %v1375
        %v1428 = vunpack.c.h.b16 %v1375
        %v1429 = vunpack.c.l.b16 %v1376
        %v1430 = vunpack.c.h.b16 %v1376
        %v1431 = vunpack.c.l.b16 %v1377
        %v1432 = vunpack.c.h.b16 %v1377
        %v1433 = vunpack.c.l.b16 %v1378
        %v1434 = vunpack.c.h.b16 %v1378
        %v1435 = vunpack.c.l.b16 %v1379
        %v1436 = vunpack.c.h.b16 %v1379
        %v1437 = vunpack.c.l.b16 %v1380
        %v1438 = vunpack.c.h.b16 %v1380
        %v1439 = vunpack.c.l.b16 %v1381
        %v1440 = vunpack.c.h.b16 %v1381
        %v1441 = vunpack.c.l.b16 %v1382
        %v1442 = vunpack.c.h.b16 %v1382
        %v1443 = vunpack.c.l.b16 %v1383
        %v1444 = vunpack.c.h.b16 %v1383
        %v1445 = vunpack.c.l.b16 %v1384
        %v1446 = vunpack.c.h.b16 %v1384
        %v1447 = vpack.c.b16 %v1417, %v1415
        %v1448 = vpack.c.b16 %v1418, %v1416
        %v1449 = vpack.c.b16 %v1421, %v1419
        %v1450 = vpack.c.b16 %v1422, %v1420
        %v1451 = vpack.c.b16 %v1425, %v1423
        %v1452 = vpack.c.b16 %v1426, %v1424
        %v1453 = vpack.c.b16 %v1429, %v1427
        %v1454 = vpack.c.b16 %v1430, %v1428
        %v1455 = vpack.c.b16 %v1433, %v1431
        %v1456 = vpack.c.b16 %v1434, %v1432
        %v1457 = vpack.c.b16 %v1437, %v1435
        %v1458 = vpack.c.b16 %v1438, %v1436
        %v1459 = vpack.c.b16 %v1441, %v1439
        %v1460 = vpack.c.b16 %v1442, %v1440
        %v1461 = vpack.c.b16 %v1445, %v1443
        %v1462 = vpack.c.b16 %v1446, %v1444
        %1479 = vmatprep.subr.bf16.mxu0 %v1462
        %1480 = vmatpush1.bf16.msra.mxu0 %v1461
        %1481 = vmatprep.subr.bf16.mxu0 %v1460
        %1482 = vmatpush1.bf16.msra.mxu0 %v1459
        %1483 = vmatprep.subr.bf16.mxu0 %v1458
        %1484 = vmatpush1.bf16.msra.mxu0 %v1457
        %1485 = vmatprep.subr.bf16.mxu0 %v1456
        %1486 = vmatpush1.bf16.msra.mxu0 %v1455
        %1487 = vmatprep.subr.bf16.mxu0 %v1454
        %1488 = vmatpush1.bf16.msra.mxu0 %v1453
        %1489 = vmatprep.subr.bf16.mxu0 %v1452
        %1490 = vmatpush1.bf16.msra.mxu0 %v1451
        %1491 = vmatprep.subr.bf16.mxu0 %v1450
        %1492 = vmatpush1.bf16.msra.mxu0 %v1449
        %1493 = vmatprep.subr.bf16.mxu0 %v1448
        %1494 = vmatpush1.bf16.msra.mxu0 %v1447
        %1495 = vmatprep.subr.bf16.mxu0 0
        %1496 = vmatpush2.bf16.msra.mxu0 0
        %1497 = vmatprep.subr.bf16.mxu0 0
        %1498 = vmatpush2.bf16.msra.mxu0 0
        %1499 = vmatprep.subr.bf16.mxu0 0
        %1500 = vmatpush2.bf16.msra.mxu0 0
        %1501 = vmatprep.subr.bf16.mxu0 0
        %1502 = vmatpush2.bf16.msra.mxu0 0
        %1503 = vmatprep.subr.bf16.mxu0 0
        %1504 = vmatpush2.bf16.msra.mxu0 0
        %1505 = vmatprep.subr.bf16.mxu0 0
        %1506 = vmatpush2.bf16.msra.mxu0 0
        %1507 = vmatprep.subr.bf16.mxu0 0
        %1508 = vmatpush2.bf16.msra.mxu0 0
        %1509 = vmatprep.subr.bf16.mxu0 0
        %1510 = vmatpush2.bf16.msra.mxu0 0
        %1511 = vmatprep.mubr.bf16.mxu0 0
        %1512 = vmatmul.mubr.bf16.gmra.mxu0 %v1385
        %v1513 = vpop.f32.mrf.mxu0
        %v1514 = vadd.f32 %v1392, %v1513
        %v1515 = vpop.f32.mrf.mxu0
        %v1516 = vadd.f32 %v1396, %v1515
        %v1517 = vpop.f32.mrf.mxu0
        %v1518 = vpop.f32.mrf.mxu0
        %1519 = vdwg.mxu0
        %v1520 = vmax.f32 %v1514, 0.0
        %v1521 = vmax.f32 %v1516, 0.0
        %v1522 = vld [vmem:[#allocation5 + $0x240] sm:$0xf]
        %v1523 = vld [vmem:[#allocation5 + $0x244] sm:$0xf]
        %v1524 = vld [vmem:[#allocation5 + $0x248] sm:$0xf]
        %v1525 = vld [vmem:[#allocation5 + $0x24c] sm:$0xf]
        %v1526 = vld [vmem:[#allocation5 + $0x250] sm:$0xf]
        %v1527 = vld [vmem:[#allocation5 + $0x254] sm:$0xf]
        %v1528 = vld [vmem:[#allocation5 + $0x258] sm:$0xf]
        %v1529 = vld [vmem:[#allocation5 + $0x25c] sm:$0xf]
        %v1530 = vld [vmem:[#allocation5 + $0x260] sm:$0xf]
        %v1531 = vld [vmem:[#allocation5 + $0x264] sm:$0xf]
        %v1532 = vld [vmem:[#allocation5 + $0x268] sm:$0xf]
        %v1533 = vld [vmem:[#allocation5 + $0x26c] sm:$0xf]
        %v1534 = vld [vmem:[#allocation5 + $0x270] sm:$0xf]
        %v1535 = vld [vmem:[#allocation5 + $0x274] sm:$0xf]
        %v1536 = vld [vmem:[#allocation5 + $0x278] sm:$0xf]
        %v1537 = vld [vmem:[#allocation5 + $0x27c] sm:$0xf]
        %v1538 = vld [vmem:[#allocation5 + $0x280] sm:$0xf]
        %v1539 = vld [vmem:[#allocation5 + $0x284] sm:$0xf]
        %v1540 = vld [vmem:[#allocation5 + $0x288] sm:$0xf]
        %v1541 = vld [vmem:[#allocation5 + $0x28c] sm:$0xf]
        %v1542 = vld [vmem:[#allocation5 + $0x290] sm:$0xf]
        %v1543 = vld [vmem:[#allocation5 + $0x294] sm:$0xf]
        %v1544 = vld [vmem:[#allocation5 + $0x298] sm:$0xf]
        %v1545 = vld [vmem:[#allocation5 + $0x29c] sm:$0xf]
        %v1546 = vld [vmem:[#allocation5 + $0x2a0] sm:$0xf]
        %v1547 = vld [vmem:[#allocation5 + $0x2a4] sm:$0xf]
        %v1548 = vld [vmem:[#allocation5 + $0x2a8] sm:$0xf]
        %v1549 = vld [vmem:[#allocation5 + $0x2ac] sm:$0xf]
        %v1550 = vld [vmem:[#allocation5 + $0x2b0] sm:$0xf]
        %v1551 = vld [vmem:[#allocation5 + $0x2b4] sm:$0xf]
        %v1552 = vld [vmem:[#allocation5 + $0x2b8] sm:$0xf]
        %v1553 = vld [vmem:[#allocation5 + $0x2bc] sm:$0xf]
        %v1554 = vpack.c.bf16 %v1520, %v1520
        %v1555 = vpack.c.bf16 %v1521, %v1521
        %v1556 = vld [vmem:[#allocation8 + $0x7] ss:$0 sm:$0xff]
        %v1589 = vunpack.c.l.b16 %v1522
        %v1590 = vunpack.c.l.b16 %v1523
        %v1591 = vunpack.c.l.b16 %v1524
        %v1592 = vunpack.c.l.b16 %v1525
        %v1593 = vunpack.c.l.b16 %v1526
        %v1594 = vunpack.c.l.b16 %v1527
        %v1595 = vunpack.c.l.b16 %v1528
        %v1596 = vunpack.c.l.b16 %v1529
        %v1597 = vunpack.c.l.b16 %v1530
        %v1598 = vunpack.c.l.b16 %v1531
        %v1599 = vunpack.c.l.b16 %v1532
        %v1600 = vunpack.c.l.b16 %v1533
        %v1601 = vunpack.c.l.b16 %v1534
        %v1602 = vunpack.c.l.b16 %v1535
        %v1603 = vunpack.c.l.b16 %v1536
        %v1604 = vunpack.c.l.b16 %v1537
        %v1605 = vunpack.c.l.b16 %v1538
        %v1606 = vunpack.c.l.b16 %v1539
        %v1607 = vunpack.c.l.b16 %v1540
        %v1608 = vunpack.c.l.b16 %v1541
        %v1609 = vunpack.c.l.b16 %v1542
        %v1610 = vunpack.c.l.b16 %v1543
        %v1611 = vunpack.c.l.b16 %v1544
        %v1612 = vunpack.c.l.b16 %v1545
        %v1613 = vunpack.c.l.b16 %v1546
        %v1614 = vunpack.c.l.b16 %v1547
        %v1615 = vunpack.c.l.b16 %v1548
        %v1616 = vunpack.c.l.b16 %v1549
        %v1617 = vunpack.c.l.b16 %v1550
        %v1618 = vunpack.c.l.b16 %v1551
        %v1619 = vunpack.c.l.b16 %v1552
        %v1620 = vunpack.c.l.b16 %v1553
        %v1621 = vpack.c.b16 %v1590, %v1589
        %v1622 = vpack.c.b16 %v1592, %v1591
        %v1623 = vpack.c.b16 %v1594, %v1593
        %v1624 = vpack.c.b16 %v1596, %v1595
        %v1625 = vpack.c.b16 %v1598, %v1597
        %v1626 = vpack.c.b16 %v1600, %v1599
        %v1627 = vpack.c.b16 %v1602, %v1601
        %v1628 = vpack.c.b16 %v1604, %v1603
        %v1629 = vpack.c.b16 %v1606, %v1605
        %v1630 = vpack.c.b16 %v1608, %v1607
        %v1631 = vpack.c.b16 %v1610, %v1609
        %v1632 = vpack.c.b16 %v1612, %v1611
        %v1633 = vpack.c.b16 %v1614, %v1613
        %v1634 = vpack.c.b16 %v1616, %v1615
        %v1635 = vpack.c.b16 %v1618, %v1617
        %v1636 = vpack.c.b16 %v1620, %v1619
        %1653 = vmatprep.subr.bf16.mxu0 0
        %1654 = vmatpush1.bf16.msra.mxu0 %v1628
        %1655 = vmatprep.subr.bf16.mxu0 0
        %1656 = vmatpush1.bf16.msra.mxu0 %v1627
        %1657 = vmatprep.subr.bf16.mxu0 0
        %1658 = vmatpush1.bf16.msra.mxu0 %v1626
        %1659 = vmatprep.subr.bf16.mxu0 0
        %1660 = vmatpush1.bf16.msra.mxu0 %v1625
        %1661 = vmatprep.subr.bf16.mxu0 0
        %1662 = vmatpush1.bf16.msra.mxu0 %v1624
        %1663 = vmatprep.subr.bf16.mxu0 0
        %1664 = vmatpush1.bf16.msra.mxu0 %v1623
        %1665 = vmatprep.subr.bf16.mxu0 0
        %1666 = vmatpush1.bf16.msra.mxu0 %v1622
        %1667 = vmatprep.subr.bf16.mxu0 0
        %1668 = vmatpush1.bf16.msra.mxu0 %v1621
        %1669 = vmatprep.subr.bf16.mxu0 0
        %1670 = vmatpush2.bf16.msra.mxu0 %v1636
        %1671 = vmatprep.subr.bf16.mxu0 0
        %1672 = vmatpush2.bf16.msra.mxu0 %v1635
        %1673 = vmatprep.subr.bf16.mxu0 0
        %1674 = vmatpush2.bf16.msra.mxu0 %v1634
        %1675 = vmatprep.subr.bf16.mxu0 0
        %1676 = vmatpush2.bf16.msra.mxu0 %v1633
        %1677 = vmatprep.subr.bf16.mxu0 0
        %1678 = vmatpush2.bf16.msra.mxu0 %v1632
        %1679 = vmatprep.subr.bf16.mxu0 0
        %1680 = vmatpush2.bf16.msra.mxu0 %v1631
        %1681 = vmatprep.subr.bf16.mxu0 0
        %1682 = vmatpush2.bf16.msra.mxu0 %v1630
        %1683 = vmatprep.subr.bf16.mxu0 0
        %1684 = vmatpush2.bf16.msra.mxu0 %v1629
        %1685 = vmatprep.mubr.bf16.mxu0 %v1555
        %1686 = vmatmul.mubr.bf16.gmra.mxu0 %v1554
        %v1687 = vpop.f32.mrf.mxu0
        %v1688 = vadd.f32 %v1556, %v1687
        %v1689 = vpop.f32.mrf.mxu0
        %v1690 = vpop.f32.mrf.mxu0
        %v1691 = vpop.f32.mrf.mxu0
        %1692 = vdwg.mxu0
        %v1693 = vadd.f32 %v1368, %v1688
        %v1694 = vld [vmem:[#allocation8 + $0x10] ss:$0 sm:$0xff]
        %v1695 = vld [vmem:[#allocation8 + $0x11] ss:$0 sm:$0xff]
        %1696 = vadd.xlane.f32.xlu0 %v1693
        %v1697 = vpop.xlane.xlu0 %1696
        %v1698 = vmul.f32 %v1697, %v1357
        %v1699 = vsub.f32 %v1693, %v1698
        %v1700 = vmul.f32 %v1699, %v1699
        %1701 = vadd.xlane.f32.xlu0 %v1700
        %v1702 = vpop.xlane.xlu0 %1701
        %v1703 = vmul.f32 %v1702, %v1357
        %v1704 = vadd.f32 %v1703, 1e-05
        %v1705 = vrsqrt.pop %v1704
        %v1706 = vmul.f32 %v1699, %v1705
        %v1707 = vmul.f32 %v1706, %v1694
        %v1708 = vadd.f32 %v1707, %v1695
        %v1709 = vld [vmem:[#allocation5 + $0x100] sm:$0xf]
        %v1710 = vld [vmem:[#allocation5 + $0x104] sm:$0xf]
        %v1711 = vld [vmem:[#allocation5 + $0x108] sm:$0xf]
        %v1712 = vld [vmem:[#allocation5 + $0x10c] sm:$0xf]
        %v1713 = vld [vmem:[#allocation5 + $0x110] sm:$0xf]
        %v1714 = vld [vmem:[#allocation5 + $0x114] sm:$0xf]
        %v1715 = vld [vmem:[#allocation5 + $0x118] sm:$0xf]
        %v1716 = vld [vmem:[#allocation5 + $0x11c] sm:$0xf]
        %v1717 = vld [vmem:[#allocation5 + $0x120] sm:$0xf]
        %v1718 = vld [vmem:[#allocation5 + $0x124] sm:$0xf]
        %v1719 = vld [vmem:[#allocation5 + $0x128] sm:$0xf]
        %v1720 = vld [vmem:[#allocation5 + $0x12c] sm:$0xf]
        %v1721 = vld [vmem:[#allocation5 + $0x130] sm:$0xf]
        %v1722 = vld [vmem:[#allocation5 + $0x134] sm:$0xf]
        %v1723 = vld [vmem:[#allocation5 + $0x138] sm:$0xf]
        %v1724 = vld [vmem:[#allocation5 + $0x13c] sm:$0xf]
        %v1725 = vpack.c.bf16 %v1708, %v1708
        %v1726 = vld [vmem:[#allocation8 + $0x12] ss:$0 sm:$0xff]
        %v1743 = vunpack.c.l.b16 %v1709
        %v1744 = vunpack.c.l.b16 %v1710
        %v1745 = vunpack.c.l.b16 %v1711
        %v1746 = vunpack.c.l.b16 %v1712
        %v1747 = vunpack.c.l.b16 %v1713
        %v1748 = vunpack.c.l.b16 %v1714
        %v1749 = vunpack.c.l.b16 %v1715
        %v1750 = vunpack.c.l.b16 %v1716
        %v1751 = vunpack.c.l.b16 %v1717
        %v1752 = vunpack.c.l.b16 %v1718
        %v1753 = vunpack.c.l.b16 %v1719
        %v1754 = vunpack.c.l.b16 %v1720
        %v1755 = vunpack.c.l.b16 %v1721
        %v1756 = vunpack.c.l.b16 %v1722
        %v1757 = vunpack.c.l.b16 %v1723
        %v1758 = vunpack.c.l.b16 %v1724
        %v1759 = vpack.c.b16 %v1744, %v1743
        %v1760 = vpack.c.b16 %v1746, %v1745
        %v1761 = vpack.c.b16 %v1748, %v1747
        %v1762 = vpack.c.b16 %v1750, %v1749
        %v1763 = vpack.c.b16 %v1752, %v1751
        %v1764 = vpack.c.b16 %v1754, %v1753
        %v1765 = vpack.c.b16 %v1756, %v1755
        %v1766 = vpack.c.b16 %v1758, %v1757
        %1775 = vmatprep.subr.bf16.mxu0 0
        %1776 = vmatpush1.bf16.msra.mxu0 %v1766
        %1777 = vmatprep.subr.bf16.mxu0 0
        %1778 = vmatpush1.bf16.msra.mxu0 %v1765
        %1779 = vmatprep.subr.bf16.mxu0 0
        %1780 = vmatpush1.bf16.msra.mxu0 %v1764
        %1781 = vmatprep.subr.bf16.mxu0 0
        %1782 = vmatpush1.bf16.msra.mxu0 %v1763
        %1783 = vmatprep.subr.bf16.mxu0 0
        %1784 = vmatpush1.bf16.msra.mxu0 %v1762
        %1785 = vmatprep.subr.bf16.mxu0 0
        %1786 = vmatpush1.bf16.msra.mxu0 %v1761
        %1787 = vmatprep.subr.bf16.mxu0 0
        %1788 = vmatpush1.bf16.msra.mxu0 %v1760
        %1789 = vmatprep.subr.bf16.mxu0 0
        %1790 = vmatpush1.bf16.msra.mxu0 %v1759
        %1791 = vmatprep.subr.bf16.mxu0 0
        %1792 = vmatpush2.bf16.msra.mxu0 0
        %1793 = vmatprep.subr.bf16.mxu0 0
        %1794 = vmatpush2.bf16.msra.mxu0 0
        %1795 = vmatprep.subr.bf16.mxu0 0
        %1796 = vmatpush2.bf16.msra.mxu0 0
        %1797 = vmatprep.subr.bf16.mxu0 0
        %1798 = vmatpush2.bf16.msra.mxu0 0
        %1799 = vmatprep.subr.bf16.mxu0 0
        %1800 = vmatpush2.bf16.msra.mxu0 0
        %1801 = vmatprep.subr.bf16.mxu0 0
        %1802 = vmatpush2.bf16.msra.mxu0 0
        %1803 = vmatprep.subr.bf16.mxu0 0
        %1804 = vmatpush2.bf16.msra.mxu0 0
        %1805 = vmatprep.subr.bf16.mxu0 0
        %1806 = vmatpush2.bf16.msra.mxu0 0
        %1807 = vmatprep.mubr.bf16.mxu0 0
        %1808 = vmatmul.mubr.bf16.gmra.mxu0 %v1725
        %v1809 = vpop.f32.mrf.mxu0
        %v1810 = vadd.f32 %v1726, %v1809
        %v1811 = vpop.f32.mrf.mxu0
        %v1812 = vpop.f32.mrf.mxu0
        %v1813 = vpop.f32.mrf.mxu0
        %1814 = vdwg.mxu0
        %v1815 = vtanh.pop %v1810
        %v1816 = vld [vmem:[#allocation5 + $0x140] sm:$0xf]
        %v1817 = vld [vmem:[#allocation5 + $0x144] sm:$0xf]
        %v1818 = vld [vmem:[#allocation5 + $0x148] sm:$0xf]
        %v1819 = vld [vmem:[#allocation5 + $0x14c] sm:$0xf]
        %v1820 = vld [vmem:[#allocation5 + $0x150] sm:$0xf]
        %v1821 = vld [vmem:[#allocation5 + $0x154] sm:$0xf]
        %v1822 = vld [vmem:[#allocation5 + $0x158] sm:$0xf]
        %v1823 = vld [vmem:[#allocation5 + $0x15c] sm:$0xf]
        %v1824 = vld [vmem:[#allocation5 + $0x160] sm:$0xf]
        %v1825 = vld [vmem:[#allocation5 + $0x164] sm:$0xf]
        %v1826 = vld [vmem:[#allocation5 + $0x168] sm:$0xf]
        %v1827 = vld [vmem:[#allocation5 + $0x16c] sm:$0xf]
        %v1828 = vld [vmem:[#allocation5 + $0x170] sm:$0xf]
        %v1829 = vld [vmem:[#allocation5 + $0x174] sm:$0xf]
        %v1830 = vld [vmem:[#allocation5 + $0x178] sm:$0xf]
        %v1831 = vld [vmem:[#allocation5 + $0x17c] sm:$0xf]
        %v1832 = vpack.c.bf16 %v1815, %v1815
        %v1833 = vld [vmem:[#allocation8 + $0x13] ss:$0 sm:$0xff]
        %v1850 = vunpack.c.l.b16 %v1816
        %v1851 = vunpack.c.l.b16 %v1817
        %v1852 = vunpack.c.l.b16 %v1818
        %v1853 = vunpack.c.l.b16 %v1819
        %v1854 = vunpack.c.l.b16 %v1820
        %v1855 = vunpack.c.l.b16 %v1821
        %v1856 = vunpack.c.l.b16 %v1822
        %v1857 = vunpack.c.l.b16 %v1823
        %v1858 = vunpack.c.l.b16 %v1824
        %v1859 = vunpack.c.l.b16 %v1825
        %v1860 = vunpack.c.l.b16 %v1826
        %v1861 = vunpack.c.l.b16 %v1827
        %v1862 = vunpack.c.l.b16 %v1828
        %v1863 = vunpack.c.l.b16 %v1829
        %v1864 = vunpack.c.l.b16 %v1830
        %v1865 = vunpack.c.l.b16 %v1831
        %v1866 = vpack.c.b16 %v1851, %v1850
        %v1867 = vpack.c.b16 %v1853, %v1852
        %v1868 = vpack.c.b16 %v1855, %v1854
        %v1869 = vpack.c.b16 %v1857, %v1856
        %v1870 = vpack.c.b16 %v1859, %v1858
        %v1871 = vpack.c.b16 %v1861, %v1860
        %v1872 = vpack.c.b16 %v1863, %v1862
        %v1873 = vpack.c.b16 %v1865, %v1864
        %1882 = vmatprep.subr.bf16.mxu0 0
        %1883 = vmatpush1.bf16.msra.mxu0 %v1873
        %1884 = vmatprep.subr.bf16.mxu0 0
        %1885 = vmatpush1.bf16.msra.mxu0 %v1872
        %1886 = vmatprep.subr.bf16.mxu0 0
        %1887 = vmatpush1.bf16.msra.mxu0 %v1871
        %1888 = vmatprep.subr.bf16.mxu0 0
        %1889 = vmatpush1.bf16.msra.mxu0 %v1870
        %1890 = vmatprep.subr.bf16.mxu0 0
        %1891 = vmatpush1.bf16.msra.mxu0 %v1869
        %1892 = vmatprep.subr.bf16.mxu0 0
        %1893 = vmatpush1.bf16.msra.mxu0 %v1868
        %1894 = vmatprep.subr.bf16.mxu0 0
        %1895 = vmatpush1.bf16.msra.mxu0 %v1867
        %1896 = vmatprep.subr.bf16.mxu0 0
        %1897 = vmatpush1.bf16.msra.mxu0 %v1866
        %1898 = vmatprep.subr.bf16.mxu0 0
        %1899 = vmatpush2.bf16.msra.mxu0 0
        %1900 = vmatprep.subr.bf16.mxu0 0
        %1901 = vmatpush2.bf16.msra.mxu0 0
        %1902 = vmatprep.subr.bf16.mxu0 0
        %1903 = vmatpush2.bf16.msra.mxu0 0
        %1904 = vmatprep.subr.bf16.mxu0 0
        %1905 = vmatpush2.bf16.msra.mxu0 0
        %1906 = vmatprep.subr.bf16.mxu0 0
        %1907 = vmatpush2.bf16.msra.mxu0 0
        %1908 = vmatprep.subr.bf16.mxu0 0
        %1909 = vmatpush2.bf16.msra.mxu0 0
        %1910 = vmatprep.subr.bf16.mxu0 0
        %1911 = vmatpush2.bf16.msra.mxu0 0
        %1912 = vmatprep.subr.bf16.mxu0 0
        %1913 = vmatpush2.bf16.msra.mxu0 0
        %1914 = vmatprep.mubr.bf16.mxu0 0
        %1915 = vmatmul.mubr.bf16.gmra.mxu0 %v1832
        %v1916 = vpop.f32.mrf.mxu0
        %v1917 = vadd.f32 %v1833, %v1916
        %v1918 = vpop.f32.mrf.mxu0
        %v1919 = vpop.f32.mrf.mxu0
        %v1920 = vpop.f32.mrf.mxu0
        %1921 = vdwg.mxu0
        %v1922 = vtanh.pop %v1917
        %v1923 = vld [vmem:[#allocation5 + $0x180] sm:$0xf]
        %v1924 = vld [vmem:[#allocation5 + $0x184] sm:$0xf]
        %v1925 = vld [vmem:[#allocation5 + $0x188] sm:$0xf]
        %v1926 = vld [vmem:[#allocation5 + $0x18c] sm:$0xf]
        %v1927 = vld [vmem:[#allocation5 + $0x190] sm:$0xf]
        %v1928 = vld [vmem:[#allocation5 + $0x194] sm:$0xf]
        %v1929 = vld [vmem:[#allocation5 + $0x198] sm:$0xf]
        %v1930 = vld [vmem:[#allocation5 + $0x19c] sm:$0xf]
        %v1931 = vld [vmem:[#allocation5 + $0x1a0] sm:$0xf]
        %v1932 = vld [vmem:[#allocation5 + $0x1a4] sm:$0xf]
        %v1933 = vld [vmem:[#allocation5 + $0x1a8] sm:$0xf]
        %v1934 = vld [vmem:[#allocation5 + $0x1ac] sm:$0xf]
        %v1935 = vld [vmem:[#allocation5 + $0x1b0] sm:$0xf]
        %v1936 = vld [vmem:[#allocation5 + $0x1b4] sm:$0xf]
        %v1937 = vld [vmem:[#allocation5 + $0x1b8] sm:$0xf]
        %v1938 = vld [vmem:[#allocation5 + $0x1bc] sm:$0xf]
        %v1939 = vpack.c.bf16 %v1922, %v1922
        %v1940 = vld [vmem:[#allocation8 + $0x14] ss:$0 sm:$0xff]
        %v1957 = vunpack.c.l.b16 %v1923
        %v1958 = vunpack.c.l.b16 %v1924
        %v1959 = vunpack.c.l.b16 %v1925
        %v1960 = vunpack.c.l.b16 %v1926
        %v1961 = vunpack.c.l.b16 %v1927
        %v1962 = vunpack.c.l.b16 %v1928
        %v1963 = vunpack.c.l.b16 %v1929
        %v1964 = vunpack.c.l.b16 %v1930
        %v1965 = vunpack.c.l.b16 %v1931
        %v1966 = vunpack.c.l.b16 %v1932
        %v1967 = vunpack.c.l.b16 %v1933
        %v1968 = vunpack.c.l.b16 %v1934
        %v1969 = vunpack.c.l.b16 %v1935
        %v1970 = vunpack.c.l.b16 %v1936
        %v1971 = vunpack.c.l.b16 %v1937
        %v1972 = vunpack.c.l.b16 %v1938
        %v1973 = vpack.c.b16 %v1958, %v1957
        %v1974 = vpack.c.b16 %v1960, %v1959
        %v1975 = vpack.c.b16 %v1962, %v1961
        %v1976 = vpack.c.b16 %v1964, %v1963
        %v1977 = vpack.c.b16 %v1966, %v1965
        %v1978 = vpack.c.b16 %v1968, %v1967
        %v1979 = vpack.c.b16 %v1970, %v1969
        %v1980 = vpack.c.b16 %v1972, %v1971
        %1989 = vmatprep.subr.bf16.mxu0 0
        %1990 = vmatpush1.bf16.msra.mxu0 %v1980
        %1991 = vmatprep.subr.bf16.mxu0 0
        %1992 = vmatpush1.bf16.msra.mxu0 %v1979
        %1993 = vmatprep.subr.bf16.mxu0 0
        %1994 = vmatpush1.bf16.msra.mxu0 %v1978
        %1995 = vmatprep.subr.bf16.mxu0 0
        %1996 = vmatpush1.bf16.msra.mxu0 %v1977
        %1997 = vmatprep.subr.bf16.mxu0 0
        %1998 = vmatpush1.bf16.msra.mxu0 %v1976
        %1999 = vmatprep.subr.bf16.mxu0 0
        %2000 = vmatpush1.bf16.msra.mxu0 %v1975
        %2001 = vmatprep.subr.bf16.mxu0 0
        %2002 = vmatpush1.bf16.msra.mxu0 %v1974
        %2003 = vmatprep.subr.bf16.mxu0 0
        %2004 = vmatpush1.bf16.msra.mxu0 %v1973
        %2005 = vmatprep.subr.bf16.mxu0 0
        %2006 = vmatpush2.bf16.msra.mxu0 0
        %2007 = vmatprep.subr.bf16.mxu0 0
        %2008 = vmatpush2.bf16.msra.mxu0 0
        %2009 = vmatprep.subr.bf16.mxu0 0
        %2010 = vmatpush2.bf16.msra.mxu0 0
        %2011 = vmatprep.subr.bf16.mxu0 0
        %2012 = vmatpush2.bf16.msra.mxu0 0
        %2013 = vmatprep.subr.bf16.mxu0 0
        %2014 = vmatpush2.bf16.msra.mxu0 0
        %2015 = vmatprep.subr.bf16.mxu0 0
        %2016 = vmatpush2.bf16.msra.mxu0 0
        %2017 = vmatprep.subr.bf16.mxu0 0
        %2018 = vmatpush2.bf16.msra.mxu0 0
        %2019 = vmatprep.subr.bf16.mxu0 0
        %2020 = vmatpush2.bf16.msra.mxu0 0
        %2021 = vmatprep.mubr.bf16.mxu0 0
        %2022 = vmatmul.mubr.bf16.gmra.mxu0 %v1939
        %v2023 = vpop.f32.mrf.mxu0
        %v2024 = vadd.f32 %v1940, %v2023
        %v2025 = vpop.f32.mrf.mxu0
        %v2026 = vpop.f32.mrf.mxu0
        %v2027 = vpop.f32.mrf.mxu0
        %2028 = vdwg.mxu0
        %v2029 = vld [vmem:[#allocation5 + $0x1c0] sm:$0xf]
        %v2030 = vld [vmem:[#allocation5 + $0x1c4] sm:$0xf]
        %v2031 = vld [vmem:[#allocation5 + $0x1c8] sm:$0xf]
        %v2032 = vld [vmem:[#allocation5 + $0x1cc] sm:$0xf]
        %v2033 = vld [vmem:[#allocation5 + $0x1d0] sm:$0xf]
        %v2034 = vld [vmem:[#allocation5 + $0x1d4] sm:$0xf]
        %v2035 = vld [vmem:[#allocation5 + $0x1d8] sm:$0xf]
        %v2036 = vld [vmem:[#allocation5 + $0x1dc] sm:$0xf]
        %v2037 = vld [vmem:[#allocation5 + $0x1e0] sm:$0xf]
        %v2038 = vld [vmem:[#allocation5 + $0x1e4] sm:$0xf]
        %v2039 = vld [vmem:[#allocation5 + $0x1e8] sm:$0xf]
        %v2040 = vld [vmem:[#allocation5 + $0x1ec] sm:$0xf]
        %v2041 = vld [vmem:[#allocation5 + $0x1f0] sm:$0xf]
        %v2042 = vld [vmem:[#allocation5 + $0x1f4] sm:$0xf]
        %v2043 = vld [vmem:[#allocation5 + $0x1f8] sm:$0xf]
        %v2044 = vld [vmem:[#allocation5 + $0x1fc] sm:$0xf]
        %v2045 = vpack.c.bf16 %v2024, %v2024
        %v2046 = vld [vmem:[#allocation8 + $0x15] ss:$0 sm:$0xff]
        %v2063 = vunpack.c.l.b16 %v2029
        %v2064 = vunpack.c.l.b16 %v2030
        %v2065 = vunpack.c.l.b16 %v2031
        %v2066 = vunpack.c.l.b16 %v2032
        %v2067 = vunpack.c.l.b16 %v2033
        %v2068 = vunpack.c.l.b16 %v2034
        %v2069 = vunpack.c.l.b16 %v2035
        %v2070 = vunpack.c.l.b16 %v2036
        %v2071 = vunpack.c.l.b16 %v2037
        %v2072 = vunpack.c.l.b16 %v2038
        %v2073 = vunpack.c.l.b16 %v2039
        %v2074 = vunpack.c.l.b16 %v2040
        %v2075 = vunpack.c.l.b16 %v2041
        %v2076 = vunpack.c.l.b16 %v2042
        %v2077 = vunpack.c.l.b16 %v2043
        %v2078 = vunpack.c.l.b16 %v2044
        %v2079 = vpack.c.b16 %v2064, %v2063
        %v2080 = vpack.c.b16 %v2066, %v2065
        %v2081 = vpack.c.b16 %v2068, %v2067
        %v2082 = vpack.c.b16 %v2070, %v2069
        %v2083 = vpack.c.b16 %v2072, %v2071
        %v2084 = vpack.c.b16 %v2074, %v2073
        %v2085 = vpack.c.b16 %v2076, %v2075
        %v2086 = vpack.c.b16 %v2078, %v2077
        %2095 = vmatprep.subr.bf16.mxu0 0
        %2096 = vmatpush1.bf16.msra.mxu0 %v2086
        %2097 = vmatprep.subr.bf16.mxu0 0
        %2098 = vmatpush1.bf16.msra.mxu0 %v2085
        %2099 = vmatprep.subr.bf16.mxu0 0
        %2100 = vmatpush1.bf16.msra.mxu0 %v2084
        %2101 = vmatprep.subr.bf16.mxu0 0
        %2102 = vmatpush1.bf16.msra.mxu0 %v2083
        %2103 = vmatprep.subr.bf16.mxu0 0
        %2104 = vmatpush1.bf16.msra.mxu0 %v2082
        %2105 = vmatprep.subr.bf16.mxu0 0
        %2106 = vmatpush1.bf16.msra.mxu0 %v2081
        %2107 = vmatprep.subr.bf16.mxu0 0
        %2108 = vmatpush1.bf16.msra.mxu0 %v2080
        %2109 = vmatprep.subr.bf16.mxu0 0
        %2110 = vmatpush1.bf16.msra.mxu0 %v2079
        %2111 = vmatprep.subr.bf16.mxu0 0
        %2112 = vmatpush2.bf16.msra.mxu0 0
        %2113 = vmatprep.subr.bf16.mxu0 0
        %2114 = vmatpush2.bf16.msra.mxu0 0
        %2115 = vmatprep.subr.bf16.mxu0 0
        %2116 = vmatpush2.bf16.msra.mxu0 0
        %2117 = vmatprep.subr.bf16.mxu0 0
        %2118 = vmatpush2.bf16.msra.mxu0 0
        %2119 = vmatprep.subr.bf16.mxu0 0
        %2120 = vmatpush2.bf16.msra.mxu0 0
        %2121 = vmatprep.subr.bf16.mxu0 0
        %2122 = vmatpush2.bf16.msra.mxu0 0
        %2123 = vmatprep.subr.bf16.mxu0 0
        %2124 = vmatpush2.bf16.msra.mxu0 0
        %2125 = vmatprep.subr.bf16.mxu0 0
        %2126 = vmatpush2.bf16.msra.mxu0 0
        %2127 = vmatprep.mubr.bf16.mxu0 0
        %2128 = vmatmul.mubr.bf16.gmra.mxu0 %v2045
        %v2129 = vpop.f32.mrf.mxu0
        %v2130 = vadd.f32 %v2046, %v2129
        %v2131 = vpop.f32.mrf.mxu0
        %v2132 = vpop.f32.mrf.mxu0
        %v2133 = vpop.f32.mrf.mxu0
        %2134 = vdwg.mxu0
        %v2135 = vmax.f32 %v2130, 0.0
        %v2136 = vld [vmem:[#allocation5 + $0x200] sm:$0xf]
        %v2137 = vld [vmem:[#allocation5 + $0x204] sm:$0xf]
        %v2138 = vld [vmem:[#allocation5 + $0x208] sm:$0xf]
        %v2139 = vld [vmem:[#allocation5 + $0x20c] sm:$0xf]
        %v2140 = vld [vmem:[#allocation5 + $0x210] sm:$0xf]
        %v2141 = vld [vmem:[#allocation5 + $0x214] sm:$0xf]
        %v2142 = vld [vmem:[#allocation5 + $0x218] sm:$0xf]
        %v2143 = vld [vmem:[#allocation5 + $0x21c] sm:$0xf]
        %v2144 = vld [vmem:[#allocation5 + $0x220] sm:$0xf]
        %v2145 = vld [vmem:[#allocation5 + $0x224] sm:$0xf]
        %v2146 = vld [vmem:[#allocation5 + $0x228] sm:$0xf]
        %v2147 = vld [vmem:[#allocation5 + $0x22c] sm:$0xf]
        %v2148 = vld [vmem:[#allocation5 + $0x230] sm:$0xf]
        %v2149 = vld [vmem:[#allocation5 + $0x234] sm:$0xf]
        %v2150 = vld [vmem:[#allocation5 + $0x238] sm:$0xf]
        %v2151 = vld [vmem:[#allocation5 + $0x23c] sm:$0xf]
        %v2152 = vpack.c.bf16 %v2135, %v2135
        %v2153 = vld [vmem:[#allocation8 + $0x16] ss:$0 sm:$0xff]
        %v2170 = vunpack.c.l.b16 %v2136
        %v2171 = vunpack.c.l.b16 %v2137
        %v2172 = vunpack.c.l.b16 %v2138
        %v2173 = vunpack.c.l.b16 %v2139
        %v2174 = vunpack.c.l.b16 %v2140
        %v2175 = vunpack.c.l.b16 %v2141
        %v2176 = vunpack.c.l.b16 %v2142
        %v2177 = vunpack.c.l.b16 %v2143
        %v2178 = vunpack.c.l.b16 %v2144
        %v2179 = vunpack.c.l.b16 %v2145
        %v2180 = vunpack.c.l.b16 %v2146
        %v2181 = vunpack.c.l.b16 %v2147
        %v2182 = vunpack.c.l.b16 %v2148
        %v2183 = vunpack.c.l.b16 %v2149
        %v2184 = vunpack.c.l.b16 %v2150
        %v2185 = vunpack.c.l.b16 %v2151
        %v2186 = vpack.c.b16 %v2171, %v2170
        %v2187 = vpack.c.b16 %v2173, %v2172
        %v2188 = vpack.c.b16 %v2175, %v2174
        %v2189 = vpack.c.b16 %v2177, %v2176
        %v2190 = vpack.c.b16 %v2179, %v2178
        %v2191 = vpack.c.b16 %v2181, %v2180
        %v2192 = vpack.c.b16 %v2183, %v2182
        %v2193 = vpack.c.b16 %v2185, %v2184
        %2202 = vmatprep.subr.bf16.mxu0 0
        %2203 = vmatpush1.bf16.msra.mxu0 %v2193
        %2204 = vmatprep.subr.bf16.mxu0 0
        %2205 = vmatpush1.bf16.msra.mxu0 %v2192
        %2206 = vmatprep.subr.bf16.mxu0 0
        %2207 = vmatpush1.bf16.msra.mxu0 %v2191
        %2208 = vmatprep.subr.bf16.mxu0 0
        %2209 = vmatpush1.bf16.msra.mxu0 %v2190
        %2210 = vmatprep.subr.bf16.mxu0 0
        %2211 = vmatpush1.bf16.msra.mxu0 %v2189
        %2212 = vmatprep.subr.bf16.mxu0 0
        %2213 = vmatpush1.bf16.msra.mxu0 %v2188
        %2214 = vmatprep.subr.bf16.mxu0 0
        %2215 = vmatpush1.bf16.msra.mxu0 %v2187
        %2216 = vmatprep.subr.bf16.mxu0 0
        %2217 = vmatpush1.bf16.msra.mxu0 %v2186
        %2218 = vmatprep.subr.bf16.mxu0 0
        %2219 = vmatpush2.bf16.msra.mxu0 0
        %2220 = vmatprep.subr.bf16.mxu0 0
        %2221 = vmatpush2.bf16.msra.mxu0 0
        %2222 = vmatprep.subr.bf16.mxu0 0
        %2223 = vmatpush2.bf16.msra.mxu0 0
        %2224 = vmatprep.subr.bf16.mxu0 0
        %2225 = vmatpush2.bf16.msra.mxu0 0
        %2226 = vmatprep.subr.bf16.mxu0 0
        %2227 = vmatpush2.bf16.msra.mxu0 0
        %2228 = vmatprep.subr.bf16.mxu0 0
        %2229 = vmatpush2.bf16.msra.mxu0 0
        %2230 = vmatprep.subr.bf16.mxu0 0
        %2231 = vmatpush2.bf16.msra.mxu0 0
        %2232 = vmatprep.subr.bf16.mxu0 0
        %2233 = vmatpush2.bf16.msra.mxu0 0
        %2234 = vmatprep.mubr.bf16.mxu0 0
        %2235 = vmatmul.mubr.bf16.gmra.mxu0 %v2152
        %v2236 = vpop.f32.mrf.mxu0
        %v2237 = vadd.f32 %v2153, %v2236
        %v2238 = vpop.f32.mrf.mxu0
        %v2239 = vpop.f32.mrf.mxu0
        %v2240 = vpop.f32.mrf.mxu0
        %2241 = vdwg.mxu0
        %2242 = vst [vmem:[%s259] sm:$0xff] %v2024
        %2243 = vst [vmem:[%s259 + $0x8] sm:$0xff] %v2237
        %s2244 = sand.u32 %s120, 1
        %s2245 = scalar_lea.sflag [#allocation4], %s2244
        %s2246 = sand.u32 %s120, 1
        %s2247 = smul.addr %s2246, 16
        %s2248 = scalar_lea.vmem [#allocation10], %s2247
        // Predicated region
        $region53: #{tpu_custom_call.1} parent=35 // pred_check
          %p2249 = pneg %p130
        $region54: #{tpu_custom_call.1} parent=35 // pred_check_branch
          %2251 = sbr.rel (%p2249) target = $region56
        $region55: #{tpu_custom_call.1} parent=35 // pred_region
          %s2253 = ssub.s32 256, 256
          %2254 = vsyncadd %s2245, %s2253
          %s2255 = smul.addr %s23, 2
          %s2256 = smul.addr %s2255, 128
          %s2257 = scalar_lea.hbm %s4, %s2256
          %s2259 = sshll.u32 %s2248, 4
          %s2260 = int_to_ptr.vmem [resolvable:$true] %s2259
          %2262 = dma.vmem_to_hbm [thread:$0]  %s2260, 256, %s2257, %s2245
        $region56: #{tpu_custom_call.1} parent=35 // pred_fallthru
          _
      $region36: #{tpu_custom_call.1} parent=5 // pred_fallthru
        _
      %p2263 = scmp.le.s32.totalorder 2, %s18
      // Predicated region
      $region57: #{tpu_custom_call.1} parent=5 // pred_check
        %p2264 = pneg %p2263
      $region58: #{tpu_custom_call.1} parent=5 // pred_check_branch
        %2266 = sbr.rel (%p2264) target = $region60
      $region59: #{tpu_custom_call.1} parent=5 // pred_region
        %s2267 = ssub.s32 %s18, 2
        // Predicated region
        $region61: #{tpu_custom_call.1} parent=59 // pred_check
          %p2268 = pneg %p136
        $region62: #{tpu_custom_call.1} parent=59 // pred_check_branch
          %2270 = sbr.rel (%p2268) target = $region64
        $region63: #{tpu_custom_call.1} parent=59 // pred_region
          %s2271 = sand.u32 %s121, 1
          %s2272 = scalar_lea.sflag [#allocation4], %s2271
          %s2273 = sand.u32 %s121, 1
          %s2274 = smul.addr %s2273, 16
          %s2275 = scalar_lea.vmem [#allocation10], %s2274
          %2276 = dma.done %s2272, 256
        $region64: #{tpu_custom_call.1} parent=59 // pred_fallthru
          _
      $region60: #{tpu_custom_call.1} parent=5 // pred_fallthru
        _
    $region6: #{tpu_custom_call.1} parent=1 // loop_footer
      %s22 = sadd.s32 1, %s18
    $region7: #{tpu_custom_call.1} parent=1 // loop_footer_branch
      %17 = sbr.rel target = $region3
    $region8: #{tpu_custom_call.1} parent=1 // loop_exit
      _
    %2277 = vsyncpa [#allocation3], 1
    %s2278 = scalar_lea.sflag [#allocation3], 1
    %2279 = vsyncpa %s2278, 1
    %2280 = vsyncpa [#allocation6], 1
    %2281 = vsyncpa [#allocation9], 1
    %2282 = vsyncpa [#allocation4], 1
    %s2283 = scalar_lea.sflag [#allocation4], 1
    %2284 = vsyncpa %s2283, 1

</llo_original>
